<compile_context>
chip_gen: v5e
topology: v5e:2x2
jax: 0.10.0
libtpu: 0.0.40
codegen_flags: <defaults>
</compile_context>

<pallas_src>
import functools

import jax
import jax.numpy as jnp
from jax.experimental import pallas as pl
from jax.experimental.pallas import tpu as pltpu

EPS = 1e-8
PRELU_ALPHA = 0.25  # PyTorch default PReLU init


def _prelu(x, alpha):
    return jnp.where(x >= 0, x, alpha * x)


def _global_ln(x, g, b, eps):
    """Global layer norm over the full tile; single-pass sum / sumsq stats."""
    n = x.shape[0] * x.shape[1]
    s1 = jnp.sum(x)
    s2 = jnp.sum(x * x)
    mean = s1 / n
    var = jnp.maximum(s2 / n - mean * mean, 0.0)
    return (x - mean) * jax.lax.rsqrt(var + eps) * g + b


# --------------------------------------------------------------------------
# Kernel 1: encoder conv + global layer norm + input 1x1 conv   (grid over B)
# --------------------------------------------------------------------------
def _encode_kernel(xr_ref, encw_ref, g_ref, b_ref, inw_ref, inb_ref,
                   feat_ref, f0_ref, *, T, eps):
    xr = xr_ref[0]                               # (T+1, hop) f32
    hop = xr.shape[1]
    encw = encw_ref[...]                         # (K, C), K = 2*hop
    # strided framing (50% overlap) expressed as two half-kernel matmuls:
    #   frames[t] = [xr[t], xr[t+1]]  =>  frames @ W = xr[:T]@W[:hop] + xr[1:]@W[hop:]
    feat = (jnp.dot(xr[0:T, :], encw[:hop, :],
                    preferred_element_type=jnp.float32)
            + jnp.dot(xr[1:T + 1, :], encw[hop:, :],
                      preferred_element_type=jnp.float32))
    feat_ref[0] = feat                           # (T, C)
    y = _global_ln(feat, g_ref[...], b_ref[...], eps)
    f0_ref[0] = (jnp.dot(y.astype(jnp.bfloat16), inw_ref[...],
                         preferred_element_type=jnp.float32) + inb_ref[...])


def encode_stage(xr, params, cfg, T):
    B, Tp1, hop = xr.shape
    K = 2 * hop
    C = cfg["encoder_dim"]
    F = cfg["separation_n_feats"]
    enc_w = params["enc_w"].T.astype(jnp.float32)            # (K, C)
    g = params["in_norm_g"].reshape(1, C).astype(jnp.float32)
    b = params["in_norm_b"].reshape(1, C).astype(jnp.float32)
    inw = params["in_conv_w"].T.astype(jnp.bfloat16)          # (C, F)
    inb = params["in_conv_b"].reshape(1, F).astype(jnp.float32)
    feat, f0 = pl.pallas_call(
        functools.partial(_encode_kernel, T=T, eps=EPS),
        out_shape=(jax.ShapeDtypeStruct((B, T, C), jnp.float32),
                   jax.ShapeDtypeStruct((B, T, F), jnp.float32)),
        grid=(B,),
        in_specs=[
            pl.BlockSpec((1, Tp1, hop), lambda i: (i, 0, 0)),
            pl.BlockSpec((K, C), lambda i: (0, 0)),
            pl.BlockSpec((1, C), lambda i: (0, 0)),
            pl.BlockSpec((1, C), lambda i: (0, 0)),
            pl.BlockSpec((C, F), lambda i: (0, 0)),
            pl.BlockSpec((1, F), lambda i: (0, 0)),
        ],
        out_specs=(pl.BlockSpec((1, T, C), lambda i: (i, 0, 0)),
                   pl.BlockSpec((1, T, F), lambda i: (i, 0, 0))),
        compiler_params=pltpu.CompilerParams(dimension_semantics=("parallel",)),
    )(xr, enc_w, g, b, inw, inb)
    return feat, f0


# --------------------------------------------------------------------------
# Kernel 2: full TCN + mask + decoder + overlap-add   grid = (2B, n_blocks)
# --------------------------------------------------------------------------
def _tcn_mask_decode_kernel(
        dil_ref,                                         # SMEM (NB,) int32
        f0_ref, feat_ref, e_ref,
        w1_ref, vh_ref, wsr_ref, bsr_ref,
        outw_ref, outb_ref, declo_ref, dechi_ref,
        wave_ref,
        f_sc, skip_sc, hp_sc,
        *, T, F, H, P, NB, alpha, eps):
    j = pl.program_id(1)
    d = dil_ref[j]                                       # dilation of block j

    @pl.when(j == 0)
    def _init():
        # fuse per-speaker embedding, zero-init skip, zero the halo rows once
        # (the aligned interior store below never touches them).
        f_sc[...] = f0_ref[0] + e_ref[0]
        skip_sc[...] = jnp.zeros_like(skip_sc)
        hp_sc[pl.ds(0, P), :] = jnp.zeros((P, H), jnp.float32)
        hp_sc[pl.ds(P + T, P), :] = jnp.zeros((P, H), jnp.float32)

    f = f_sc[...]                                        # (T, F) f32
    b1 = vh_ref[0, 0:1, :]
    g1 = vh_ref[0, 1:2, :]
    be1 = vh_ref[0, 2:3, :]
    w_lo = vh_ref[0, 3:4, :]
    w_c = vh_ref[0, 4:5, :]
    w_hi = vh_ref[0, 5:6, :]
    bdw = vh_ref[0, 6:7, :]
    g2 = vh_ref[0, 7:8, :]
    be2 = vh_ref[0, 8:9, :]

    # 1x1 conv (bf16 MXU, f32 acc) -> PReLU -> global LN (single-pass stats)
    h = jnp.dot(f.astype(jnp.bfloat16), w1_ref[0],
                preferred_element_type=jnp.float32) + b1
    h = _global_ln(_prelu(h, alpha), g1, be1, eps)

    # dilated depthwise conv (k=3, padding=d): interior store always starts at
    # sublane-aligned offset P, halos pre-zeroed, centre tap from registers.
    hp_sc[pl.ds(P, T), :] = h
    acc = (hp_sc[pl.ds(P - d, T), :] * w_lo
           + h * w_c
           + hp_sc[pl.ds(P + d, T), :] * w_hi) + bdw
    h = _global_ln(_prelu(acc, alpha), g2, be2, eps)

    # merged skip / residual 1x1 convs: one (T,H)@(H,2F) MXU matmul
    sr = jnp.dot(h.astype(jnp.bfloat16), wsr_ref[0],
                 preferred_element_type=jnp.float32) + bsr_ref[0]
    skip_sc[...] = skip_sc[...] + sr[:, 0:F]
    f_sc[...] = f + sr[:, F:2 * F]

    @pl.when(j == NB - 1)
    def _finish():
        # output PReLU -> mask 1x1 conv -> sigmoid -> mask * encoder features
        s = _prelu(skip_sc[...], alpha)
        m = jax.nn.sigmoid(
            jnp.dot(s.astype(jnp.bfloat16), outw_ref[...],
                    preferred_element_type=jnp.float32) + outb_ref[...])
        dmix = (m * feat_ref[0]).astype(jnp.bfloat16)    # (T, C)
        # decoder (ConvTranspose1d, stride = hop) + overlap-add fused:
        #   wave[r] = dmix[r] @ W[:, :hop] + dmix[r-1] @ W[:, hop:]
        fr_lo = jnp.dot(dmix, declo_ref[...], preferred_element_type=jnp.float32)
        fr_hi = jnp.dot(dmix, dechi_ref[...], preferred_element_type=jnp.float32)
        wave_ref[0, 0:1, :] = fr_lo[0:1, :]
        wave_ref[0, 1:T, :] = fr_lo[1:T, :] + fr_hi[0:T - 1, :]
        wave_ref[0, T:T + 1, :] = fr_hi[T - 1:T, :]


def _prepare_tcn_weights(blocks, F, H, L):
    """Stack per-block weights along a leading block axis in kernel layouts."""
    w1 = jnp.stack([b["w1"].T for b in blocks]).astype(jnp.bfloat16)     # (NB,F,H)
    vh = jnp.stack([
        jnp.stack([b["b1"], b["g1"], b["be1"],
                   b["wdw"][:, 0], b["wdw"][:, 1], b["wdw"][:, 2],
                   b["bdw"], b["g2"], b["be2"]])
        for b in blocks]).astype(jnp.float32)                            # (NB,9,H)
    wsr_l, bsr_l = [], []
    for b in blocks:
        wres = b["wres"] if b["wres"] is not None else jnp.zeros((F, H), jnp.float32)
        bres = b["bres"] if b["bres"] is not None else jnp.zeros((F,), jnp.float32)
        wsr_l.append(jnp.concatenate([b["wskip"].T, wres.T], axis=1))    # (H, 2F)
        bsr_l.append(jnp.concatenate([b["bskip"], bres]))                # (2F,)
    wsr = jnp.stack(wsr_l).astype(jnp.bfloat16)                          # (NB,H,2F)
    bsr = jnp.stack(bsr_l)[:, None, :].astype(jnp.float32)               # (NB,1,2F)
    dil = jnp.asarray([2 ** (i % L) for i in range(len(blocks))], jnp.int32)
    return w1, vh, wsr, bsr, dil


def separation_and_decode(f0, feat, e, params, cfg):
    B, T, C = feat.shape
    B2 = e.shape[0]
    F = cfg["separation_n_feats"]
    H = cfg["separation_n_hidden"]
    L = cfg["separation_n_layers"]
    hop = cfg["encoder_kernel_size"] // 2

    w1, vh, wsr, bsr, dil = _prepare_tcn_weights(params["blocks"], F, H, L)
    NB = len(params["blocks"])
    dmax = 2 ** (L - 1)
    P = max(8, ((dmax + 7) // 8) * 8)                 # sublane-aligned halo depth

    outw = params["out_w"].T.astype(jnp.bfloat16)     # (F, C), n_sources == 1
    outb = params["out_b"].reshape(1, C).astype(jnp.float32)
    declo = params["dec_w"][:, :hop].astype(jnp.bfloat16)   # (C, hop)
    dechi = params["dec_w"][:, hop:].astype(jnp.bfloat16)   # (C, hop)
    e3 = e.reshape(B2, 1, F).astype(jnp.float32)

    kernel = functools.partial(_tcn_mask_decode_kernel, T=T, F=F, H=H, P=P,
                               NB=NB, alpha=PRELU_ALPHA, eps=EPS)
    const2 = lambda i, j, dref: (0, 0)
    blk3 = lambda i, j, dref: (j, 0, 0)
    grid_spec = pltpu.PrefetchScalarGridSpec(
        num_scalar_prefetch=1,
        grid=(B2, NB),
        in_specs=[
            pl.BlockSpec((1, T, F), lambda i, j, dref, B=B: (i % B, 0, 0)),  # f0
            pl.BlockSpec((1, T, C), lambda i, j, dref, B=B: (i % B, 0, 0)),  # feat
            pl.BlockSpec((1, 1, F), lambda i, j, dref: (i, 0, 0)),           # emb proj
            pl.BlockSpec((1, F, H), blk3),                                   # w1
            pl.BlockSpec((1, 9, H), blk3),                                   # packed H-vecs
            pl.BlockSpec((1, H, 2 * F), blk3),                               # merged skip/res W
            pl.BlockSpec((1, 1, 2 * F), blk3),                               # merged skip/res b
            pl.BlockSpec((F, C), const2),                                    # mask conv W
            pl.BlockSpec((1, C), const2),                                    # mask conv b
            pl.BlockSpec((C, hop), const2),                                  # decoder low half
            pl.BlockSpec((C, hop), const2),                                  # decoder high half
        ],
        out_specs=pl.BlockSpec((1, T + 1, hop), lambda i, j, dref: (i, 0, 0)),
        scratch_shapes=[
            pltpu.VMEM((T, F), jnp.float32),             # running residual f
            pltpu.VMEM((T, F), jnp.float32),             # running skip sum
            pltpu.VMEM((T + 2 * P, H), jnp.float32),     # depthwise halo buffer
        ],
    )
    wave = pl.pallas_call(
        kernel,
        out_shape=jax.ShapeDtypeStruct((B2, T + 1, hop), jnp.float32),
        grid_spec=grid_spec,
        compiler_params=pltpu.CompilerParams(
            dimension_semantics=("parallel", "arbitrary"),
            vmem_limit_bytes=64 * 1024 * 1024),
    )(dil, f0, feat, e3, w1, vh, wsr, bsr, outw, outb, declo, dechi)
    return wave


# --------------------------------------------------------------------------
# Parameters (deterministic, in-script, PyTorch layouts)
# --------------------------------------------------------------------------
def init_params(key, cfg):
    K = cfg["encoder_kernel_size"]
    C = cfg["encoder_dim"]
    F = cfg["separation_n_feats"]
    H = cfg["separation_n_hidden"]
    L = cfg["separation_n_layers"]
    S = cfg["separation_n_stacks"]
    E = cfg["embed_dim"]
    nsrc = cfg["n_sources"]

    keys = iter(jax.random.split(key, 512))

    def rnd(shape, scale=0.05):
        return scale * jax.random.normal(next(keys), shape, dtype=jnp.float32)

    p = {}
    p["enc_w"] = rnd((C, K))                 # Conv1d(1, C, K) weight, squeezed
    p["dec_w"] = rnd((C, K))                 # ConvTranspose1d(C, 1, K) weight, squeezed
    p["in_norm_g"] = jnp.ones((C,), jnp.float32)
    p["in_norm_b"] = jnp.zeros((C,), jnp.float32)
    p["in_conv_w"], p["in_conv_b"] = rnd((F, C)), rnd((F,))
    p["emb_w"], p["emb_b"] = rnd((F, E)), rnd((F,))

    blocks = []
    for s in range(S):
        for l in range(L):
            no_res = (s == S - 1) and (l == L - 1)
            blocks.append(dict(
                w1=rnd((H, F)), b1=rnd((H,)),
                g1=jnp.ones((H,), jnp.float32), be1=jnp.zeros((H,), jnp.float32),
                wdw=rnd((H, 3)), bdw=rnd((H,)),
                g2=jnp.ones((H,), jnp.float32), be2=jnp.zeros((H,), jnp.float32),
                wskip=rnd((F, H)), bskip=rnd((F,)),
                wres=None if no_res else rnd((F, H)),
                bres=None if no_res else rnd((F,)),
            ))
    p["blocks"] = blocks
    p["out_w"], p["out_b"] = rnd((nsrc * C, F)), rnd((nsrc * C,))
    return p


# --------------------------------------------------------------------------
# Forward pass (both speakers batched through one fused TCN kernel)
# --------------------------------------------------------------------------
def convtasnet_forward(params, cfg, mix_audio, emb_s1, emb_s2):
    K = cfg["encoder_kernel_size"]
    assert K % 2 == 0, "overlap-add decoder assumes an even encoder kernel"
    assert cfg["n_sources"] == 1, "visual-embedding path implies n_sources == 1"
    assert cfg["separation_kernel_size"] == 3, "depthwise conv hard-wired for k=3"
    hop = K // 2
    pad = K // 2
    B, Lw = mix_audio.shape
    assert Lw % hop == 0, "reference decoder .view() requires Lw % stride == 0"

    # ---- Encoder framing: pad then view as (B, T+1, hop); frame t = rows t,t+1
    xp = jnp.pad(mix_audio.astype(jnp.float32), ((0, 0), (pad, pad)))
    T = Lw // hop + 1
    xr = xp[:, :(T + 1) * hop].reshape(B, T + 1, hop)

    # ---- Fused encoder + global-LN + input 1x1 conv (shared by both speakers)
    feat, f0 = encode_stage(xr, params, cfg, T)          # (B,T,C), (B,T,F)

    # ---- Per-speaker visual-embedding projection (tiny XLA matmul); the whole
    #      TCN + mask + decoder then runs as ONE Pallas kernel on the 2B batch.
    # TODO(synk): replace the additive embedding fusion once the real
    # Separation module definition is available.
    emb = jnp.concatenate([emb_s1, emb_s2], axis=0).astype(jnp.float32)   # (2B, E)
    e = emb @ params["emb_w"].T.astype(jnp.float32) + params["emb_b"]     # (2B, F)

    wave = separation_and_decode(f0, feat, e, params, cfg)   # (2B, T+1, hop)

    # ---- Crop the ConvTranspose padding
    full = wave.reshape(2 * B, (T + 1) * hop)
    out = full[:, pad:pad + Lw]
    return {"speaker_1": out[:B], "speaker_2": out[B:]}


# --------------------------------------------------------------------------
if __name__ == "__main__":
    cfg = dict(
        encoder_kernel_size=16,
        encoder_dim=64,
        separation_kernel_size=3,
        separation_n_feats=32,
        separation_n_hidden=64,
        separation_n_layers=2,
        separation_n_stacks=2,
        embed_dim=32,
        n_sources=1,
    )
    key = jax.random.PRNGKey(0)
    kp, ka, k1, k2 = jax.random.split(key, 4)
    params = init_params(kp, cfg)

    B, Lw = 2, 120  # -> T = 16 encoder frames; decoder reconstructs length 120
    mix_audio = jax.random.normal(ka, (B, Lw), dtype=jnp.float32)
    emb_s1 = jax.random.normal(k1, (B, cfg["embed_dim"]), dtype=jnp.float32)
    emb_s2 = jax.random.normal(k2, (B, cfg["embed_dim"]), dtype=jnp.float32)

    fwd = jax.jit(lambda p, a, e1, e2: convtasnet_forward(p, cfg, a, e1, e2))
    out = fwd(params, mix_audio, emb_s1, emb_s2)
    jax.block_until_ready(out["speaker_1"])
    jax.block_until_ready(out["speaker_2"])
    assert out["speaker_1"].shape == (B, Lw)
    assert out["speaker_2"].shape == (B, Lw)
    print("KERNEL_OK")
</pallas_src>

<mosaic_0001>
module attributes {stable_mosaic.version = 11 : i64} {
  func.func @_encode_kernel(%arg0: i32, %arg1: memref<1x17x8xf32, #tpu.memory_space<vmem>>, %arg2: memref<16x64xf32, #tpu.memory_space<vmem>>, %arg3: memref<1x64xf32, #tpu.memory_space<vmem>>, %arg4: memref<1x64xf32, #tpu.memory_space<vmem>>, %arg5: memref<64x32xbf16, #tpu.memory_space<vmem>>, %arg6: memref<1x32xf32, #tpu.memory_space<vmem>>, %arg7: memref<1x16x64xf32, #tpu.memory_space<vmem>>, %arg8: memref<1x16x32xf32, #tpu.memory_space<vmem>>) attributes {dimension_semantics = [#tpu.dimension_semantics<parallel>], iteration_bounds = array<i64: 2>, scalar_prefetch = 0 : i64, scratch_operands = 0 : i64, tpu.core_type = #tpu.core_type<tc>, window_params = [{transform_indices = @transform_0, window_bounds = array<i64: 1, 17, 8>}, {pipeline_mode = #tpu.pipeline_mode<synchronous>, transform_indices = @transform_1, window_bounds = array<i64: 16, 64>}, {pipeline_mode = #tpu.pipeline_mode<synchronous>, transform_indices = @transform_2, window_bounds = array<i64: 1, 64>}, {pipeline_mode = #tpu.pipeline_mode<synchronous>, transform_indices = @transform_3, window_bounds = array<i64: 1, 64>}, {pipeline_mode = #tpu.pipeline_mode<synchronous>, transform_indices = @transform_4, window_bounds = array<i64: 64, 32>}, {pipeline_mode = #tpu.pipeline_mode<synchronous>, transform_indices = @transform_5, window_bounds = array<i64: 1, 32>}, {transform_indices = @transform_6, window_bounds = array<i64: 1, 16, 64>}, {transform_indices = @transform_7, window_bounds = array<i64: 1, 16, 32>}]} {
    %c0 = arith.constant 0 : index
    %c0_0 = arith.constant 0 : index
    %c0_1 = arith.constant 0 : index
    %0 = vector.load %arg1[%c0, %c0_0, %c0_1] : memref<1x17x8xf32, #tpu.memory_space<vmem>>, vector<1x17x8xf32>
    %1 = vector.shape_cast %0 : vector<1x17x8xf32> to vector<17x8xf32>
    %c0_2 = arith.constant 0 : index
    %c0_3 = arith.constant 0 : index
    %2 = vector.load %arg2[%c0_2, %c0_3] : memref<16x64xf32, #tpu.memory_space<vmem>>, vector<16x64xf32>
    %3 = vector.extract_strided_slice %1 {offsets = [0, 0], sizes = [16, 8], strides = [1, 1]} : vector<17x8xf32> to vector<16x8xf32>
    %4 = vector.extract_strided_slice %2 {offsets = [0, 0], sizes = [8, 64], strides = [1, 1]} : vector<16x64xf32> to vector<8x64xf32>
    %cst = arith.constant dense<0.000000e+00> : vector<16x64xf32>
    %5 = tpu.matmul %3, %4, %cst {dimension_numbers = #tpu.dot_dimension_numbers<[1], [0], [0], [1], [0, 0, 1, 1], [], []>} : vector<16x8xf32>, vector<8x64xf32>, vector<16x64xf32> -> vector<16x64xf32>
    %6 = vector.extract_strided_slice %1 {offsets = [1, 0], sizes = [16, 8], strides = [1, 1]} : vector<17x8xf32> to vector<16x8xf32>
    %7 = vector.extract_strided_slice %2 {offsets = [8, 0], sizes = [8, 64], strides = [1, 1]} : vector<16x64xf32> to vector<8x64xf32>
    %cst_4 = arith.constant dense<0.000000e+00> : vector<16x64xf32>
    %8 = tpu.matmul %6, %7, %cst_4 {dimension_numbers = #tpu.dot_dimension_numbers<[1], [0], [0], [1], [0, 0, 1, 1], [], []>} : vector<16x8xf32>, vector<8x64xf32>, vector<16x64xf32> -> vector<16x64xf32>
    %9 = arith.addf %5, %8 : vector<16x64xf32>
    %c0_5 = arith.constant 0 : index
    %c0_6 = arith.constant 0 : index
    %c0_7 = arith.constant 0 : index
    %10 = vector.load %arg7[%c0_5, %c0_6, %c0_7] : memref<1x16x64xf32, #tpu.memory_space<vmem>>, vector<1x16x64xf32>
    %11 = vector.shape_cast %10 : vector<1x16x64xf32> to vector<16x64xf32>
    %12 = vector.shape_cast %9 : vector<16x64xf32> to vector<1x16x64xf32>
    tpu.vector_store %arg7[%c0_5, %c0_6, %c0_7], %12 {strides = array<i32>} : memref<1x16x64xf32, #tpu.memory_space<vmem>>, vector<1x16x64xf32>,
    %c0_8 = arith.constant 0 : index
    %c0_9 = arith.constant 0 : index
    %13 = vector.load %arg3[%c0_8, %c0_9] : memref<1x64xf32, #tpu.memory_space<vmem>>, vector<1x64xf32>
    %c0_10 = arith.constant 0 : index
    %c0_11 = arith.constant 0 : index
    %14 = vector.load %arg4[%c0_10, %c0_11] : memref<1x64xf32, #tpu.memory_space<vmem>>, vector<1x64xf32>
    %15 = vector.shape_cast %9 : vector<16x64xf32> to vector<1x16x64xf32>
    %cst_12 = arith.constant dense<0.000000e+00> : vector<1xf32>
    %16 = vector.multi_reduction <add>, %15, %cst_12 [1, 2] : vector<1x16x64xf32> to vector<1xf32>
    %17 = vector.shape_cast %16 : vector<1xf32> to vector<1x1x1xf32>
    %18 = vector.extract %17[0, 0, 0] : f32 from vector<1x1x1xf32>
    %19 = arith.mulf %9, %9 : vector<16x64xf32>
    %20 = vector.shape_cast %19 : vector<16x64xf32> to vector<1x16x64xf32>
    %cst_13 = arith.constant dense<0.000000e+00> : vector<1xf32>
    %21 = vector.multi_reduction <add>, %20, %cst_13 [1, 2] : vector<1x16x64xf32> to vector<1xf32>
    %22 = vector.shape_cast %21 : vector<1xf32> to vector<1x1x1xf32>
    %23 = vector.extract %22[0, 0, 0] : f32 from vector<1x1x1xf32>
    %cst_14 = arith.constant 1.024000e+03 : f32
    %24 = arith.divf %18, %cst_14 : f32
    %cst_15 = arith.constant 1.024000e+03 : f32
    %25 = arith.divf %23, %cst_15 : f32
    %26 = arith.mulf %24, %24 : f32
    %27 = arith.subf %25, %26 : f32
    %cst_16 = arith.constant 0.000000e+00 : f32
    %28 = arith.maximumf %27, %cst_16 : f32
    %29 = vector.broadcast %24 : f32 to vector<16x64xf32>
    %30 = arith.subf %9, %29 : vector<16x64xf32>
    %cst_17 = arith.constant 9.99999993E-9 : f32
    %31 = arith.addf %28, %cst_17 : f32
    %32 = math.rsqrt %31 : f32
    %33 = vector.broadcast %32 : f32 to vector<16x64xf32>
    %34 = arith.mulf %30, %33 : vector<16x64xf32>
    %35 = vector.broadcast %13 : vector<1x64xf32> to vector<16x64xf32>
    %36 = arith.mulf %34, %35 : vector<16x64xf32>
    %37 = vector.broadcast %14 : vector<1x64xf32> to vector<16x64xf32>
    %38 = arith.addf %36, %37 : vector<16x64xf32>
    %39 = arith.truncf %38 : vector<16x64xf32> to vector<16x64xbf16>
    %c0_18 = arith.constant 0 : index
    %c0_19 = arith.constant 0 : index
    %40 = vector.load %arg5[%c0_18, %c0_19] : memref<64x32xbf16, #tpu.memory_space<vmem>>, vector<64x32xbf16>
    %cst_20 = arith.constant dense<0.000000e+00> : vector<16x32xf32>
    %41 = tpu.matmul %39, %40, %cst_20 {dimension_numbers = #tpu.dot_dimension_numbers<[1], [0], [0], [1], [0, 0, 1, 1], [], []>} : vector<16x64xbf16>, vector<64x32xbf16>, vector<16x32xf32> -> vector<16x32xf32>
    %c0_21 = arith.constant 0 : index
    %c0_22 = arith.constant 0 : index
    %42 = vector.load %arg6[%c0_21, %c0_22] : memref<1x32xf32, #tpu.memory_space<vmem>>, vector<1x32xf32>
    %43 = vector.broadcast %42 : vector<1x32xf32> to vector<16x32xf32>
    %44 = arith.addf %41, %43 : vector<16x32xf32>
    %c0_23 = arith.constant 0 : index
    %c0_24 = arith.constant 0 : index
    %c0_25 = arith.constant 0 : index
    %45 = vector.load %arg8[%c0_23, %c0_24, %c0_25] : memref<1x16x32xf32, #tpu.memory_space<vmem>>, vector<1x16x32xf32>
    %46 = vector.shape_cast %45 : vector<1x16x32xf32> to vector<16x32xf32>
    %47 = vector.shape_cast %44 : vector<16x32xf32> to vector<1x16x32xf32>
    tpu.vector_store %arg8[%c0_23, %c0_24, %c0_25], %47 {strides = array<i32>} : memref<1x16x32xf32, #tpu.memory_space<vmem>>, vector<1x16x32xf32>,
    return
  }
  func.func @transform_0(%arg0: i32) -> (i32, i32, i32) {
    %c0_i32 = arith.constant 0 : i32
    %c0_i32_0 = arith.constant 0 : i32
    %c0_i32_1 = arith.constant 0 : i32
    return %arg0, %c0_i32, %c0_i32_0 : i32, i32, i32
  }
  func.func @transform_1(%arg0: i32) -> (i32, i32) {
    %c0_i32 = arith.constant 0 : i32
    %c0_i32_0 = arith.constant 0 : i32
    %c0_i32_1 = arith.constant 0 : i32
    return %c0_i32, %c0_i32_0 : i32, i32
  }
  func.func @transform_2(%arg0: i32) -> (i32, i32) {
    %c0_i32 = arith.constant 0 : i32
    %c0_i32_0 = arith.constant 0 : i32
    %c0_i32_1 = arith.constant 0 : i32
    return %c0_i32, %c0_i32_0 : i32, i32
  }
  func.func @transform_3(%arg0: i32) -> (i32, i32) {
    %c0_i32 = arith.constant 0 : i32
    %c0_i32_0 = arith.constant 0 : i32
    %c0_i32_1 = arith.constant 0 : i32
    return %c0_i32, %c0_i32_0 : i32, i32
  }
  func.func @transform_4(%arg0: i32) -> (i32, i32) {
    %c0_i32 = arith.constant 0 : i32
    %c0_i32_0 = arith.constant 0 : i32
    %c0_i32_1 = arith.constant 0 : i32
    return %c0_i32, %c0_i32_0 : i32, i32
  }
  func.func @transform_5(%arg0: i32) -> (i32, i32) {
    %c0_i32 = arith.constant 0 : i32
    %c0_i32_0 = arith.constant 0 : i32
    %c0_i32_1 = arith.constant 0 : i32
    return %c0_i32, %c0_i32_0 : i32, i32
  }
  func.func @transform_6(%arg0: i32) -> (i32, i32, i32) {
    %c0_i32 = arith.constant 0 : i32
    %c0_i32_0 = arith.constant 0 : i32
    %c0_i32_1 = arith.constant 0 : i32
    return %arg0, %c0_i32, %c0_i32_0 : i32, i32, i32
  }
  func.func @transform_7(%arg0: i32) -> (i32, i32, i32) {
    %c0_i32 = arith.constant 0 : i32
    %c0_i32_0 = arith.constant 0 : i32
    %c0_i32_1 = arith.constant 0 : i32
    return %arg0, %c0_i32, %c0_i32_0 : i32, i32, i32
  }
}

module attributes {stable_mosaic.version = 11 : i64} {
  func.func @_tcn_mask_decode_kernel(%arg0: i32, %arg1: i32, %arg2: memref<4xi32, #tpu.memory_space<smem>>, %arg3: memref<1x16x32xf32, #tpu.memory_space<vmem>>, %arg4: memref<1x16x64xf32, #tpu.memory_space<vmem>>, %arg5: memref<1x1x32xf32, #tpu.memory_space<vmem>>, %arg6: memref<1x32x64xbf16, #tpu.memory_space<vmem>>, %arg7: memref<1x9x64xf32, #tpu.memory_space<vmem>>, %arg8: memref<1x64x64xbf16, #tpu.memory_space<vmem>>, %arg9: memref<1x1x64xf32, #tpu.memory_space<vmem>>, %arg10: memref<32x64xbf16, #tpu.memory_space<vmem>>, %arg11: memref<1x64xf32, #tpu.memory_space<vmem>>, %arg12: memref<64x8xbf16, #tpu.memory_space<vmem>>, %arg13: memref<64x8xbf16, #tpu.memory_space<vmem>>, %arg14: memref<1x17x8xf32, #tpu.memory_space<vmem>>, %arg15: memref<16x32xf32, #tpu.memory_space<vmem>>, %arg16: memref<16x32xf32, #tpu.memory_space<vmem>>, %arg17: memref<32x64xf32, #tpu.memory_space<vmem>>) attributes {dimension_semantics = [#tpu.dimension_semantics<parallel>, #tpu.dimension_semantics<arbitrary>], iteration_bounds = array<i64: 4, 4>, scalar_prefetch = 1 : i64, scratch_operands = 3 : i64, tpu.core_type = #tpu.core_type<tc>, window_params = [{transform_indices = @transform_0, window_bounds = array<i64: 1, 16, 32>}, {transform_indices = @transform_1, window_bounds = array<i64: 1, 16, 64>}, {transform_indices = @transform_2, window_bounds = array<i64: 1, 1, 32>}, {transform_indices = @transform_3, window_bounds = array<i64: 1, 32, 64>}, {transform_indices = @transform_4, window_bounds = array<i64: 1, 9, 64>}, {transform_indices = @transform_5, window_bounds = array<i64: 1, 64, 64>}, {transform_indices = @transform_6, window_bounds = array<i64: 1, 1, 64>}, {pipeline_mode = #tpu.pipeline_mode<synchronous>, transform_indices = @transform_7, window_bounds = array<i64: 32, 64>}, {pipeline_mode = #tpu.pipeline_mode<synchronous>, transform_indices = @transform_8, window_bounds = array<i64: 1, 64>}, {pipeline_mode = #tpu.pipeline_mode<synchronous>, transform_indices = @transform_9, window_bounds = array<i64: 64, 8>}, {pipeline_mode = #tpu.pipeline_mode<synchronous>, transform_indices = @transform_10, window_bounds = array<i64: 64, 8>}, {transform_indices = @transform_11, window_bounds = array<i64: 1, 17, 8>}]} {
    %0 = arith.index_cast %arg1 : i32 to index
    %1 = memref.load %arg2[%0] : memref<4xi32, #tpu.memory_space<smem>>
    %c0_i32 = arith.constant 0 : i32
    %2 = arith.cmpi eq, %arg1, %c0_i32 : i32
    %3 = arith.extui %2 : i1 to i32
    %c0_i32_0 = arith.constant 0 : i32
    %4 = arith.cmpi ne, %3, %c0_i32_0 : i32
    scf.if %4 {
      %c0_59 = arith.constant 0 : index
      %c0_60 = arith.constant 0 : index
      %c0_61 = arith.constant 0 : index
      %123 = vector.load %arg3[%c0_59, %c0_60, %c0_61] : memref<1x16x32xf32, #tpu.memory_space<vmem>>, vector<1x16x32xf32>
      %124 = vector.shape_cast %123 : vector<1x16x32xf32> to vector<16x32xf32>
      %c0_62 = arith.constant 0 : index
      %c0_63 = arith.constant 0 : index
      %c0_64 = arith.constant 0 : index
      %125 = vector.load %arg5[%c0_62, %c0_63, %c0_64] : memref<1x1x32xf32, #tpu.memory_space<vmem>>, vector<1x1x32xf32>
      %126 = vector.shape_cast %125 : vector<1x1x32xf32> to vector<1x32xf32>
      %127 = vector.broadcast %126 : vector<1x32xf32> to vector<16x32xf32>
      %128 = arith.addf %124, %127 : vector<16x32xf32>
      %c0_65 = arith.constant 0 : index
      %c0_66 = arith.constant 0 : index
      %129 = vector.load %arg15[%c0_65, %c0_66] : memref<16x32xf32, #tpu.memory_space<vmem>>, vector<16x32xf32>
      tpu.vector_store %arg15[%c0_65, %c0_66], %128 {strides = array<i32>} : memref<16x32xf32, #tpu.memory_space<vmem>>, vector<16x32xf32>,
      %cst_67 = arith.constant 0.000000e+00 : f32
      %130 = vector.broadcast %cst_67 : f32 to vector<16x32xf32>
      %c0_68 = arith.constant 0 : index
      %c0_69 = arith.constant 0 : index
      %131 = vector.load %arg16[%c0_68, %c0_69] : memref<16x32xf32, #tpu.memory_space<vmem>>, vector<16x32xf32>
      tpu.vector_store %arg16[%c0_68, %c0_69], %130 {strides = array<i32>} : memref<16x32xf32, #tpu.memory_space<vmem>>, vector<16x32xf32>,
      %cst_70 = arith.constant 0.000000e+00 : f32
      %132 = vector.broadcast %cst_70 : f32 to vector<8x64xf32>
      %c0_71 = arith.constant 0 : index
      %c0_72 = arith.constant 0 : index
      %133 = vector.load %arg17[%c0_71, %c0_72] : memref<32x64xf32, #tpu.memory_space<vmem>>, vector<8x64xf32>
      tpu.vector_store %arg17[%c0_71, %c0_72], %132 {strides = array<i32>} : memref<32x64xf32, #tpu.memory_space<vmem>>, vector<8x64xf32>,
      %cst_73 = arith.constant 0.000000e+00 : f32
      %134 = vector.broadcast %cst_73 : f32 to vector<8x64xf32>
      %c24 = arith.constant 24 : index
      %c0_74 = arith.constant 0 : index
      %135 = vector.load %arg17[%c24, %c0_74] : memref<32x64xf32, #tpu.memory_space<vmem>>, vector<8x64xf32>
      tpu.vector_store %arg17[%c24, %c0_74], %134 {strides = array<i32>} : memref<32x64xf32, #tpu.memory_space<vmem>>, vector<8x64xf32>,
    } else {
    }
    %c0 = arith.constant 0 : index
    %c0_1 = arith.constant 0 : index
    %5 = vector.load %arg15[%c0, %c0_1] : memref<16x32xf32, #tpu.memory_space<vmem>>, vector<16x32xf32>
    %c0_2 = arith.constant 0 : index
    %c0_3 = arith.constant 0 : index
    %c0_4 = arith.constant 0 : index
    %6 = vector.load %arg7[%c0_2, %c0_3, %c0_4] : memref<1x9x64xf32, #tpu.memory_space<vmem>>, vector<1x1x64xf32>
    %7 = vector.shape_cast %6 : vector<1x1x64xf32> to vector<1x64xf32>
    %c0_5 = arith.constant 0 : index
    %c1 = arith.constant 1 : index
    %c0_6 = arith.constant 0 : index
    %8 = vector.load %arg7[%c0_5, %c1, %c0_6] : memref<1x9x64xf32, #tpu.memory_space<vmem>>, vector<1x1x64xf32>
    %9 = vector.shape_cast %8 : vector<1x1x64xf32> to vector<1x64xf32>
    %c0_7 = arith.constant 0 : index
    %c2 = arith.constant 2 : index
    %c0_8 = arith.constant 0 : index
    %10 = vector.load %arg7[%c0_7, %c2, %c0_8] : memref<1x9x64xf32, #tpu.memory_space<vmem>>, vector<1x1x64xf32>
    %11 = vector.shape_cast %10 : vector<1x1x64xf32> to vector<1x64xf32>
    %c0_9 = arith.constant 0 : index
    %c3 = arith.constant 3 : index
    %c0_10 = arith.constant 0 : index
    %12 = vector.load %arg7[%c0_9, %c3, %c0_10] : memref<1x9x64xf32, #tpu.memory_space<vmem>>, vector<1x1x64xf32>
    %13 = vector.shape_cast %12 : vector<1x1x64xf32> to vector<1x64xf32>
    %c0_11 = arith.constant 0 : index
    %c4 = arith.constant 4 : index
    %c0_12 = arith.constant 0 : index
    %14 = vector.load %arg7[%c0_11, %c4, %c0_12] : memref<1x9x64xf32, #tpu.memory_space<vmem>>, vector<1x1x64xf32>
    %15 = vector.shape_cast %14 : vector<1x1x64xf32> to vector<1x64xf32>
    %c0_13 = arith.constant 0 : index
    %c5 = arith.constant 5 : index
    %c0_14 = arith.constant 0 : index
    %16 = vector.load %arg7[%c0_13, %c5, %c0_14] : memref<1x9x64xf32, #tpu.memory_space<vmem>>, vector<1x1x64xf32>
    %17 = vector.shape_cast %16 : vector<1x1x64xf32> to vector<1x64xf32>
    %c0_15 = arith.constant 0 : index
    %c6 = arith.constant 6 : index
    %c0_16 = arith.constant 0 : index
    %18 = vector.load %arg7[%c0_15, %c6, %c0_16] : memref<1x9x64xf32, #tpu.memory_space<vmem>>, vector<1x1x64xf32>
    %19 = vector.shape_cast %18 : vector<1x1x64xf32> to vector<1x64xf32>
    %c0_17 = arith.constant 0 : index
    %c7 = arith.constant 7 : index
    %c0_18 = arith.constant 0 : index
    %20 = vector.load %arg7[%c0_17, %c7, %c0_18] : memref<1x9x64xf32, #tpu.memory_space<vmem>>, vector<1x1x64xf32>
    %21 = vector.shape_cast %20 : vector<1x1x64xf32> to vector<1x64xf32>
    %c0_19 = arith.constant 0 : index
    %c8 = arith.constant 8 : index
    %c0_20 = arith.constant 0 : index
    %22 = vector.load %arg7[%c0_19, %c8, %c0_20] : memref<1x9x64xf32, #tpu.memory_space<vmem>>, vector<1x1x64xf32>
    %23 = vector.shape_cast %22 : vector<1x1x64xf32> to vector<1x64xf32>
    %24 = arith.truncf %5 : vector<16x32xf32> to vector<16x32xbf16>
    %c0_21 = arith.constant 0 : index
    %c0_22 = arith.constant 0 : index
    %c0_23 = arith.constant 0 : index
    %25 = vector.load %arg6[%c0_21, %c0_22, %c0_23] : memref<1x32x64xbf16, #tpu.memory_space<vmem>>, vector<1x32x64xbf16>
    %26 = vector.shape_cast %25 : vector<1x32x64xbf16> to vector<32x64xbf16>
    %cst = arith.constant dense<0.000000e+00> : vector<16x64xf32>
    %27 = tpu.matmul %24, %26, %cst {dimension_numbers = #tpu.dot_dimension_numbers<[1], [0], [0], [1], [0, 0, 1, 1], [], []>} : vector<16x32xbf16>, vector<32x64xbf16>, vector<16x64xf32> -> vector<16x64xf32>
    %28 = vector.broadcast %7 : vector<1x64xf32> to vector<16x64xf32>
    %29 = arith.addf %27, %28 : vector<16x64xf32>
    %cst_24 = arith.constant 0.000000e+00 : f32
    %30 = vector.broadcast %cst_24 : f32 to vector<16x64xf32>
    %31 = arith.cmpf oge, %29, %30 : vector<16x64xf32>
    %cst_25 = arith.constant 2.500000e-01 : f32
    %32 = vector.broadcast %cst_25 : f32 to vector<16x64xf32>
    %33 = arith.mulf %32, %29 : vector<16x64xf32>
    %34 = arith.select %31, %29, %33 : vector<16x64xi1>, vector<16x64xf32>
    %35 = vector.shape_cast %34 : vector<16x64xf32> to vector<1x16x64xf32>
    %cst_26 = arith.constant dense<0.000000e+00> : vector<1xf32>
    %36 = vector.multi_reduction <add>, %35, %cst_26 [1, 2] : vector<1x16x64xf32> to vector<1xf32>
    %37 = vector.shape_cast %36 : vector<1xf32> to vector<1x1x1xf32>
    %38 = vector.extract %37[0, 0, 0] : f32 from vector<1x1x1xf32>
    %39 = arith.mulf %34, %34 : vector<16x64xf32>
    %40 = vector.shape_cast %39 : vector<16x64xf32> to vector<1x16x64xf32>
    %cst_27 = arith.constant dense<0.000000e+00> : vector<1xf32>
    %41 = vector.multi_reduction <add>, %40, %cst_27 [1, 2] : vector<1x16x64xf32> to vector<1xf32>
    %42 = vector.shape_cast %41 : vector<1xf32> to vector<1x1x1xf32>
    %43 = vector.extract %42[0, 0, 0] : f32 from vector<1x1x1xf32>
    %cst_28 = arith.constant 1.024000e+03 : f32
    %44 = arith.divf %38, %cst_28 : f32
    %cst_29 = arith.constant 1.024000e+03 : f32
    %45 = arith.divf %43, %cst_29 : f32
    %46 = arith.mulf %44, %44 : f32
    %47 = arith.subf %45, %46 : f32
    %cst_30 = arith.constant 0.000000e+00 : f32
    %48 = arith.maximumf %47, %cst_30 : f32
    %49 = vector.broadcast %44 : f32 to vector<16x64xf32>
    %50 = arith.subf %34, %49 : vector<16x64xf32>
    %cst_31 = arith.constant 9.99999993E-9 : f32
    %51 = arith.addf %48, %cst_31 : f32
    %52 = math.rsqrt %51 : f32
    %53 = vector.broadcast %52 : f32 to vector<16x64xf32>
    %54 = arith.mulf %50, %53 : vector<16x64xf32>
    %55 = vector.broadcast %9 : vector<1x64xf32> to vector<16x64xf32>
    %56 = arith.mulf %54, %55 : vector<16x64xf32>
    %57 = vector.broadcast %11 : vector<1x64xf32> to vector<16x64xf32>
    %58 = arith.addf %56, %57 : vector<16x64xf32>
    %c8_32 = arith.constant 8 : index
    %c0_33 = arith.constant 0 : index
    %59 = vector.load %arg17[%c8_32, %c0_33] : memref<32x64xf32, #tpu.memory_space<vmem>>, vector<16x64xf32>
    tpu.vector_store %arg17[%c8_32, %c0_33], %58 {strides = array<i32>} : memref<32x64xf32, #tpu.memory_space<vmem>>, vector<16x64xf32>,
    %c8_i32 = arith.constant 8 : i32
    %60 = arith.subi %c8_i32, %1 : i32
    %61 = arith.index_cast %60 : i32 to index
    %c0_34 = arith.constant 0 : index
    %62 = vector.load %arg17[%61, %c0_34] : memref<32x64xf32, #tpu.memory_space<vmem>>, vector<16x64xf32>
    %63 = vector.broadcast %13 : vector<1x64xf32> to vector<16x64xf32>
    %64 = arith.mulf %62, %63 : vector<16x64xf32>
    %65 = vector.broadcast %15 : vector<1x64xf32> to vector<16x64xf32>
    %66 = arith.mulf %58, %65 : vector<16x64xf32>
    %67 = arith.addf %64, %66 : vector<16x64xf32>
    %c8_i32_35 = arith.constant 8 : i32
    %68 = arith.addi %c8_i32_35, %1 : i32
    %69 = arith.index_cast %68 : i32 to index
    %c0_36 = arith.constant 0 : index
    %70 = vector.load %arg17[%69, %c0_36] : memref<32x64xf32, #tpu.memory_space<vmem>>, vector<16x64xf32>
    %71 = vector.broadcast %17 : vector<1x64xf32> to vector<16x64xf32>
    %72 = arith.mulf %70, %71 : vector<16x64xf32>
    %73 = arith.addf %67, %72 : vector<16x64xf32>
    %74 = vector.broadcast %19 : vector<1x64xf32> to vector<16x64xf32>
    %75 = arith.addf %73, %74 : vector<16x64xf32>
    %cst_37 = arith.constant 0.000000e+00 : f32
    %76 = vector.broadcast %cst_37 : f32 to vector<16x64xf32>
    %77 = arith.cmpf oge, %75, %76 : vector<16x64xf32>
    %cst_38 = arith.constant 2.500000e-01 : f32
    %78 = vector.broadcast %cst_38 : f32 to vector<16x64xf32>
    %79 = arith.mulf %78, %75 : vector<16x64xf32>
    %80 = arith.select %77, %75, %79 : vector<16x64xi1>, vector<16x64xf32>
    %81 = vector.shape_cast %80 : vector<16x64xf32> to vector<1x16x64xf32>
    %cst_39 = arith.constant dense<0.000000e+00> : vector<1xf32>
    %82 = vector.multi_reduction <add>, %81, %cst_39 [1, 2] : vector<1x16x64xf32> to vector<1xf32>
    %83 = vector.shape_cast %82 : vector<1xf32> to vector<1x1x1xf32>
    %84 = vector.extract %83[0, 0, 0] : f32 from vector<1x1x1xf32>
    %85 = arith.mulf %80, %80 : vector<16x64xf32>
    %86 = vector.shape_cast %85 : vector<16x64xf32> to vector<1x16x64xf32>
    %cst_40 = arith.constant dense<0.000000e+00> : vector<1xf32>
    %87 = vector.multi_reduction <add>, %86, %cst_40 [1, 2] : vector<1x16x64xf32> to vector<1xf32>
    %88 = vector.shape_cast %87 : vector<1xf32> to vector<1x1x1xf32>
    %89 = vector.extract %88[0, 0, 0] : f32 from vector<1x1x1xf32>
    %cst_41 = arith.constant 1.024000e+03 : f32
    %90 = arith.divf %84, %cst_41 : f32
    %cst_42 = arith.constant 1.024000e+03 : f32
    %91 = arith.divf %89, %cst_42 : f32
    %92 = arith.mulf %90, %90 : f32
    %93 = arith.subf %91, %92 : f32
    %cst_43 = arith.constant 0.000000e+00 : f32
    %94 = arith.maximumf %93, %cst_43 : f32
    %95 = vector.broadcast %90 : f32 to vector<16x64xf32>
    %96 = arith.subf %80, %95 : vector<16x64xf32>
    %cst_44 = arith.constant 9.99999993E-9 : f32
    %97 = arith.addf %94, %cst_44 : f32
    %98 = math.rsqrt %97 : f32
    %99 = vector.broadcast %98 : f32 to vector<16x64xf32>
    %100 = arith.mulf %96, %99 : vector<16x64xf32>
    %101 = vector.broadcast %21 : vector<1x64xf32> to vector<16x64xf32>
    %102 = arith.mulf %100, %101 : vector<16x64xf32>
    %103 = vector.broadcast %23 : vector<1x64xf32> to vector<16x64xf32>
    %104 = arith.addf %102, %103 : vector<16x64xf32>
    %105 = arith.truncf %104 : vector<16x64xf32> to vector<16x64xbf16>
    %c0_45 = arith.constant 0 : index
    %c0_46 = arith.constant 0 : index
    %c0_47 = arith.constant 0 : index
    %106 = vector.load %arg8[%c0_45, %c0_46, %c0_47] : memref<1x64x64xbf16, #tpu.memory_space<vmem>>, vector<1x64x64xbf16>
    %107 = vector.shape_cast %106 : vector<1x64x64xbf16> to vector<64x64xbf16>
    %cst_48 = arith.constant dense<0.000000e+00> : vector<16x64xf32>
    %108 = tpu.matmul %105, %107, %cst_48 {dimension_numbers = #tpu.dot_dimension_numbers<[1], [0], [0], [1], [0, 0, 1, 1], [], []>} : vector<16x64xbf16>, vector<64x64xbf16>, vector<16x64xf32> -> vector<16x64xf32>
    %c0_49 = arith.constant 0 : index
    %c0_50 = arith.constant 0 : index
    %c0_51 = arith.constant 0 : index
    %109 = vector.load %arg9[%c0_49, %c0_50, %c0_51] : memref<1x1x64xf32, #tpu.memory_space<vmem>>, vector<1x1x64xf32>
    %110 = vector.shape_cast %109 : vector<1x1x64xf32> to vector<1x64xf32>
    %111 = vector.broadcast %110 : vector<1x64xf32> to vector<16x64xf32>
    %112 = arith.addf %108, %111 : vector<16x64xf32>
    %c0_52 = arith.constant 0 : index
    %c0_53 = arith.constant 0 : index
    %113 = vector.load %arg16[%c0_52, %c0_53] : memref<16x32xf32, #tpu.memory_space<vmem>>, vector<16x32xf32>
    %114 = vector.extract_strided_slice %112 {offsets = [0, 0], sizes = [16, 32], strides = [1, 1]} : vector<16x64xf32> to vector<16x32xf32>
    %115 = arith.addf %113, %114 : vector<16x32xf32>
    %c0_54 = arith.constant 0 : index
    %c0_55 = arith.constant 0 : index
    %116 = vector.load %arg16[%c0_54, %c0_55] : memref<16x32xf32, #tpu.memory_space<vmem>>, vector<16x32xf32>
    tpu.vector_store %arg16[%c0_54, %c0_55], %115 {strides = array<i32>} : memref<16x32xf32, #tpu.memory_space<vmem>>, vector<16x32xf32>,
    %117 = vector.extract_strided_slice %112 {offsets = [0, 32], sizes = [16, 32], strides = [1, 1]} : vector<16x64xf32> to vector<16x32xf32>
    %118 = arith.addf %5, %117 : vector<16x32xf32>
    %c0_56 = arith.constant 0 : index
    %c0_57 = arith.constant 0 : index
    %119 = vector.load %arg15[%c0_56, %c0_57] : memref<16x32xf32, #tpu.memory_space<vmem>>, vector<16x32xf32>
    tpu.vector_store %arg15[%c0_56, %c0_57], %118 {strides = array<i32>} : memref<16x32xf32, #tpu.memory_space<vmem>>, vector<16x32xf32>,
    %c3_i32 = arith.constant 3 : i32
    %120 = arith.cmpi eq, %arg1, %c3_i32 : i32
    %121 = arith.extui %120 : i1 to i32
    %c0_i32_58 = arith.constant 0 : i32
    %122 = arith.cmpi ne, %121, %c0_i32_58 : i32
    scf.if %122 {
      %c0_59 = arith.constant 0 : index
      %c0_60 = arith.constant 0 : index
      %123 = vector.load %arg16[%c0_59, %c0_60] : memref<16x32xf32, #tpu.memory_space<vmem>>, vector<16x32xf32>
      %cst_61 = arith.constant 0.000000e+00 : f32
      %124 = vector.broadcast %cst_61 : f32 to vector<16x32xf32>
      %125 = arith.cmpf oge, %123, %124 : vector<16x32xf32>
      %cst_62 = arith.constant 2.500000e-01 : f32
      %126 = vector.broadcast %cst_62 : f32 to vector<16x32xf32>
      %127 = arith.mulf %126, %123 : vector<16x32xf32>
      %128 = arith.select %125, %123, %127 : vector<16x32xi1>, vector<16x32xf32>
      %129 = arith.truncf %128 : vector<16x32xf32> to vector<16x32xbf16>
      %c0_63 = arith.constant 0 : index
      %c0_64 = arith.constant 0 : index
      %130 = vector.load %arg10[%c0_63, %c0_64] : memref<32x64xbf16, #tpu.memory_space<vmem>>, vector<32x64xbf16>
      %cst_65 = arith.constant dense<0.000000e+00> : vector<16x64xf32>
      %131 = tpu.matmul %129, %130, %cst_65 {dimension_numbers = #tpu.dot_dimension_numbers<[1], [0], [0], [1], [0, 0, 1, 1], [], []>} : vector<16x32xbf16>, vector<32x64xbf16>, vector<16x64xf32> -> vector<16x64xf32>
      %c0_66 = arith.constant 0 : index
      %c0_67 = arith.constant 0 : index
      %132 = vector.load %arg11[%c0_66, %c0_67] : memref<1x64xf32, #tpu.memory_space<vmem>>, vector<1x64xf32>
      %133 = vector.broadcast %132 : vector<1x64xf32> to vector<16x64xf32>
      %134 = arith.addf %131, %133 : vector<16x64xf32>
      %135 = arith.negf %134 : vector<16x64xf32>
      %136 = math.exp %135 : vector<16x64xf32>
      %cst_68 = arith.constant 1.000000e+00 : f32
      %137 = vector.broadcast %cst_68 : f32 to vector<16x64xf32>
      %138 = arith.addf %137, %136 : vector<16x64xf32>
      %139 = arith.divf %137, %138 : vector<16x64xf32>
      %c0_69 = arith.constant 0 : index
      %c0_70 = arith.constant 0 : index
      %c0_71 = arith.constant 0 : index
      %140 = vector.load %arg4[%c0_69, %c0_70, %c0_71] : memref<1x16x64xf32, #tpu.memory_space<vmem>>, vector<1x16x64xf32>
      %141 = vector.shape_cast %140 : vector<1x16x64xf32> to vector<16x64xf32>
      %142 = arith.mulf %139, %141 : vector<16x64xf32>
      %143 = arith.truncf %142 : vector<16x64xf32> to vector<16x64xbf16>
      %c0_72 = arith.constant 0 : index
      %c0_73 = arith.constant 0 : index
      %144 = vector.load %arg12[%c0_72, %c0_73] : memref<64x8xbf16, #tpu.memory_space<vmem>>, vector<64x8xbf16>
      %cst_74 = arith.constant dense<0.000000e+00> : vector<16x8xf32>
      %145 = tpu.matmul %143, %144, %cst_74 {dimension_numbers = #tpu.dot_dimension_numbers<[1], [0], [0], [1], [0, 0, 1, 1], [], []>} : vector<16x64xbf16>, vector<64x8xbf16>, vector<16x8xf32> -> vector<16x8xf32>
      %c0_75 = arith.constant 0 : index
      %c0_76 = arith.constant 0 : index
      %146 = vector.load %arg13[%c0_75, %c0_76] : memref<64x8xbf16, #tpu.memory_space<vmem>>, vector<64x8xbf16>
      %cst_77 = arith.constant dense<0.000000e+00> : vector<16x8xf32>
      %147 = tpu.matmul %143, %146, %cst_77 {dimension_numbers = #tpu.dot_dimension_numbers<[1], [0], [0], [1], [0, 0, 1, 1], [], []>} : vector<16x64xbf16>, vector<64x8xbf16>, vector<16x8xf32> -> vector<16x8xf32>
      %148 = vector.extract_strided_slice %145 {offsets = [0, 0], sizes = [1, 8], strides = [1, 1]} : vector<16x8xf32> to vector<1x8xf32>
      %c0_78 = arith.constant 0 : index
      %c0_79 = arith.constant 0 : index
      %c0_80 = arith.constant 0 : index
      %149 = vector.load %arg14[%c0_78, %c0_79, %c0_80] : memref<1x17x8xf32, #tpu.memory_space<vmem>>, vector<1x1x8xf32>
      %150 = vector.shape_cast %149 : vector<1x1x8xf32> to vector<1x8xf32>
      %151 = vector.shape_cast %148 : vector<1x8xf32> to vector<1x1x8xf32>
      tpu.vector_store %arg14[%c0_78, %c0_79, %c0_80], %151 {strides = array<i32>} : memref<1x17x8xf32, #tpu.memory_space<vmem>>, vector<1x1x8xf32>,
      %152 = vector.extract_strided_slice %145 {offsets = [1, 0], sizes = [15, 8], strides = [1, 1]} : vector<16x8xf32> to vector<15x8xf32>
      %153 = vector.extract_strided_slice %147 {offsets = [0, 0], sizes = [15, 8], strides = [1, 1]} : vector<16x8xf32> to vector<15x8xf32>
      %154 = arith.addf %152, %153 : vector<15x8xf32>
      %c0_81 = arith.constant 0 : index
      %c1_82 = arith.constant 1 : index
      %c0_83 = arith.constant 0 : index
      %155 = vector.load %arg14[%c0_81, %c1_82, %c0_83] : memref<1x17x8xf32, #tpu.memory_space<vmem>>, vector<1x15x8xf32>
      %156 = vector.shape_cast %155 : vector<1x15x8xf32> to vector<15x8xf32>
      %157 = vector.shape_cast %154 : vector<15x8xf32> to vector<1x15x8xf32>
      tpu.vector_store %arg14[%c0_81, %c1_82, %c0_83], %157 {strides = array<i32>} : memref<1x17x8xf32, #tpu.memory_space<vmem>>, vector<1x15x8xf32>,
      %158 = vector.extract_strided_slice %147 {offsets = [15, 0], sizes = [1, 8], strides = [1, 1]} : vector<16x8xf32> to vector<1x8xf32>
      %c0_84 = arith.constant 0 : index
      %c16 = arith.constant 16 : index
      %c0_85 = arith.constant 0 : index
      %159 = vector.load %arg14[%c0_84, %c16, %c0_85] : memref<1x17x8xf32, #tpu.memory_space<vmem>>, vector<1x1x8xf32>
      %160 = vector.shape_cast %159 : vector<1x1x8xf32> to vector<1x8xf32>
      %161 = vector.shape_cast %158 : vector<1x8xf32> to vector<1x1x8xf32>
      tpu.vector_store %arg14[%c0_84, %c16, %c0_85], %161 {strides = array<i32>} : memref<1x17x8xf32, #tpu.memory_space<vmem>>, vector<1x1x8xf32>,
    } else {
    }
    return
  }
  func.func @transform_0(%arg0: i32, %arg1: i32, %arg2: memref<4xi32, #tpu.memory_space<smem>>) -> (i32, i32, i32) {
    %c2_i32 = arith.constant 2 : i32
    %c0_i32 = arith.constant 0 : i32
    %0 = arith.cmpi eq, %c2_i32, %c0_i32 : i32
    %c1_i32 = arith.constant 1 : i32
    %1 = arith.select %0, %c1_i32, %c2_i32 : i32
    %2 = arith.remsi %arg0, %1 : i32
    %c0_i32_0 = arith.constant 0 : i32
    %3 = arith.cmpi ne, %2, %c0_i32_0 : i32
    %c0_i32_1 = arith.constant 0 : i32
    %4 = arith.cmpi slt, %2, %c0_i32_1 : i32
    %c0_i32_2 = arith.constant 0 : i32
    %5 = arith.cmpi slt, %1, %c0_i32_2 : i32
    %6 = arith.xori %4, %5 : i1
    %7 = arith.andi %6, %3 : i1
    %8 = arith.addi %2, %1 : i32
    %9 = arith.select %7, %8, %2 : i32
    %c0_i32_3 = arith.constant 0 : i32
    %c0_i32_4 = arith.constant 0 : i32
    %c0_i32_5 = arith.constant 0 : i32
    return %9, %c0_i32_3, %c0_i32_4 : i32, i32, i32
  }
  func.func @transform_1(%arg0: i32, %arg1: i32, %arg2: memref<4xi32, #tpu.memory_space<smem>>) -> (i32, i32, i32) {
    %c2_i32 = arith.constant 2 : i32
    %c0_i32 = arith.constant 0 : i32
    %0 = arith.cmpi eq, %c2_i32, %c0_i32 : i32
    %c1_i32 = arith.constant 1 : i32
    %1 = arith.select %0, %c1_i32, %c2_i32 : i32
    %2 = arith.remsi %arg0, %1 : i32
    %c0_i32_0 = arith.constant 0 : i32
    %3 = arith.cmpi ne, %2, %c0_i32_0 : i32
    %c0_i32_1 = arith.constant 0 : i32
    %4 = arith.cmpi slt, %2, %c0_i32_1 : i32
    %c0_i32_2 = arith.constant 0 : i32
    %5 = arith.cmpi slt, %1, %c0_i32_2 : i32
    %6 = arith.xori %4, %5 : i1
    %7 = arith.andi %6, %3 : i1
    %8 = arith.addi %2, %1 : i32
    %9 = arith.select %7, %8, %2 : i32
    %c0_i32_3 = arith.constant 0 : i32
    %c0_i32_4 = arith.constant 0 : i32
    %c0_i32_5 = arith.constant 0 : i32
    return %9, %c0_i32_3, %c0_i32_4 : i32, i32, i32
  }
  func.func @transform_2(%arg0: i32, %arg1: i32, %arg2: memref<4xi32, #tpu.memory_space<smem>>) -> (i32, i32, i32) {
    %c0_i32 = arith.constant 0 : i32
    %c0_i32_0 = arith.constant 0 : i32
    %c0_i32_1 = arith.constant 0 : i32
    return %arg0, %c0_i32, %c0_i32_0 : i32, i32, i32
  }
  func.func @transform_3(%arg0: i32, %arg1: i32, %arg2: memref<4xi32, #tpu.memory_space<smem>>) -> (i32, i32, i32) {
    %c0_i32 = arith.constant 0 : i32
    %c0_i32_0 = arith.constant 0 : i32
    %c0_i32_1 = arith.constant 0 : i32
    return %arg1, %c0_i32, %c0_i32_0 : i32, i32, i32
  }
  func.func @transform_4(%arg0: i32, %arg1: i32, %arg2: memref<4xi32, #tpu.memory_space<smem>>) -> (i32, i32, i32) {
    %c0_i32 = arith.constant 0 : i32
    %c0_i32_0 = arith.constant 0 : i32
    %c0_i32_1 = arith.constant 0 : i32
    return %arg1, %c0_i32, %c0_i32_0 : i32, i32, i32
  }
  func.func @transform_5(%arg0: i32, %arg1: i32, %arg2: memref<4xi32, #tpu.memory_space<smem>>) -> (i32, i32, i32) {
    %c0_i32 = arith.constant 0 : i32
    %c0_i32_0 = arith.constant 0 : i32
    %c0_i32_1 = arith.constant 0 : i32
    return %arg1, %c0_i32, %c0_i32_0 : i32, i32, i32
  }
  func.func @transform_6(%arg0: i32, %arg1: i32, %arg2: memref<4xi32, #tpu.memory_space<smem>>) -> (i32, i32, i32) {
    %c0_i32 = arith.constant 0 : i32
    %c0_i32_0 = arith.constant 0 : i32
    %c0_i32_1 = arith.constant 0 : i32
    return %arg1, %c0_i32, %c0_i32_0 : i32, i32, i32
  }
  func.func @transform_7(%arg0: i32, %arg1: i32, %arg2: memref<4xi32, #tpu.memory_space<smem>>) -> (i32, i32) {
    %c0_i32 = arith.constant 0 : i32
    %c0_i32_0 = arith.constant 0 : i32
    %c0_i32_1 = arith.constant 0 : i32
    return %c0_i32, %c0_i32_0 : i32, i32
  }
  func.func @transform_8(%arg0: i32, %arg1: i32, %arg2: memref<4xi32, #tpu.memory_space<smem>>) -> (i32, i32) {
    %c0_i32 = arith.constant 0 : i32
    %c0_i32_0 = arith.constant 0 : i32
    %c0_i32_1 = arith.constant 0 : i32
    return %c0_i32, %c0_i32_0 : i32, i32
  }
  func.func @transform_9(%arg0: i32, %arg1: i32, %arg2: memref<4xi32, #tpu.memory_space<smem>>) -> (i32, i32) {
    %c0_i32 = arith.constant 0 : i32
    %c0_i32_0 = arith.constant 0 : i32
    %c0_i32_1 = arith.constant 0 : i32
    return %c0_i32, %c0_i32_0 : i32, i32
  }
  func.func @transform_10(%arg0: i32, %arg1: i32, %arg2: memref<4xi32, #tpu.memory_space<smem>>) -> (i32, i32) {
    %c0_i32 = arith.constant 0 : i32
    %c0_i32_0 = arith.constant 0 : i32
    %c0_i32_1 = arith.constant 0 : i32
    return %c0_i32, %c0_i32_0 : i32, i32
  }
  func.func @transform_11(%arg0: i32, %arg1: i32, %arg2: memref<4xi32, #tpu.memory_space<smem>>) -> (i32, i32, i32) {
    %c0_i32 = arith.constant 0 : i32
    %c0_i32_0 = arith.constant 0 : i32
    %c0_i32_1 = arith.constant 0 : i32
    return %arg0, %c0_i32, %c0_i32_0 : i32, i32, i32
  }
}

</mosaic_0001>

<llo_original>
// kernel: _lambda_.2
$region0: #{_lambda_.2}
  #allocation0 [shape = 'u32[]', space=smem, size = 0x4, offset = 0x4, fixed_abs, tag = 'smem constant byte address 0x4 - core index']
  #allocation1 [shape = 'u32[72,128]{1,0:T(1,128)}', space=vmem, size = 0x9000, scoped, tag = 'internal scratch']
  %s0 = inlined_call_operand.vmem [shape: f32[2,17,8], index: 0, kind: input, shape index: {}]
  %s1 = inlined_call_operand.vmem [shape: f32[16,64], index: 1, kind: input, shape index: {}]
  %s2 = inlined_call_operand.vmem [shape: f32[1,64], index: 2, kind: input, shape index: {}]
  %s3 = inlined_call_operand.vmem [shape: f32[1,64], index: 3, kind: input, shape index: {}]
  %s4 = inlined_call_operand.vmem [shape: bf16[64,32], index: 4, kind: input, shape index: {}]
  %s5 = inlined_call_operand.vmem [shape: f32[1,32], index: 5, kind: input, shape index: {}]
  %s6 = inlined_call_operand.vmem [shape: f32[2,16,64], index: 6, kind: output, shape index: {0}]
  %s7 = inlined_call_operand.vmem [shape: f32[2,16,32], index: 7, kind: output, shape index: {1}]
  %8 = xla_tuple %s6, %s7
  %s9 = sld [smem:[#allocation0]]
  $region65: #{_lambda_.2} parent=0
    _
  %s11 = ssub.s32 1, %s9
  %s12 = scalar_select 0, %s11, %s9
  loop: start=0, step=1, limit=4
  $region2: #{_lambda_.2} parent=0 // loop_pre_header
    _
  $region3: #{_lambda_.2} parent=0 // loop_header
    %s14 = sphi 0, %s18
    %p15 = scmp.ge.s32.totalorder %s14, 4
    %s24 = sphi 0, %s26
    %s27 = sphi 0, %s24
    %s28 = sphi 0, %s27
    %s44 = sphi 0, %s28
    %s48 = sphi 0, %s48
    %s50 = sphi 0, %s48
    %s51 = sphi 0, %s50
    %s65 = sphi 0, %s51
    %s69 = sphi 0, %s69
    %s71 = sphi 0, %s69
    %s72 = sphi 0, %s71
    %s86 = sphi 0, %s72
    %s90 = sphi 0, %s90
    %s92 = sphi 0, %s90
    %s93 = sphi 0, %s92
    %s107 = sphi 0, %s93
    %s111 = sphi 0, %s111
    %s113 = sphi 0, %s111
    %s114 = sphi 0, %s113
    %s128 = sphi 0, %s114
    %s132 = sphi 0, %s132
    %s134 = sphi 0, %s132
    %s135 = sphi 0, %s134
    %s149 = sphi 0, %s135
    %s155 = sphi 0, %s157
    %s158 = sphi 0, %s155
    %s159 = sphi 0, %s158
    %s175 = sphi 0, %s159
    %s181 = sphi 0, %s183
    %s184 = sphi 0, %s181
    %s185 = sphi 0, %s184
    %s201 = sphi 0, %s185
  $region4: #{_lambda_.2} parent=0 // loop_header_branch
    %17 = sbr.rel (%p15) target = $region8
  $region5: #{_lambda_.2} parent=0 // loop_body
    %s19 = ssub.s32 %s14, 1
    %s20 = ssub.s32 %s14, 2
    %s21 = sadd.s32 %s14, 1
    %s22 = ssub.s32 %s14, %s21
    %p23 = scmp.eq.s32.totalorder %s22, 0
    %s25 = sadd.s32 %s24, 1
    %s26 = scalar_select %p23, %s24, %s25
    %p29 = pneg %p23
    %p30 = scmp.eq.s32.totalorder %s14, 1
    %p31 = por %p29, %p30
    %p32 = scmp.ne.s32.totalorder %s24, %s27
    %p33 = scmp.eq.s32.totalorder %s14, 0
    %p34 = por %p32, %p33
    %p35 = scmp.ne.s32.totalorder %s24, %s27
    %p36 = scmp.eq.s32.totalorder %s19, 1
    %p37 = por %p35, %p36
    %p38 = scmp.ne.s32.totalorder %s27, %s28
    %p39 = scmp.eq.s32.totalorder %s19, 0
    %p40 = por %p38, %p39
    %p41 = scmp.ne.s32.totalorder %s27, %s28
    %p42 = scmp.eq.s32.totalorder %s20, 1
    %p43 = por %p41, %p42
    %p45 = scmp.ne.s32.totalorder %s28, %s44
    %p46 = scmp.eq.s32.totalorder %s20, 0
    %p47 = por %p45, %p46
    %s49 = sadd.s32 %s48, 1
    %p52 = scmp.eq.s32.totalorder %s14, 1
    %p53 = scmp.ne.s32.totalorder %s48, %s50
    %p54 = scmp.eq.s32.totalorder %s14, 0
    %p55 = por %p53, %p54
    %p56 = scmp.ne.s32.totalorder %s48, %s50
    %p57 = scmp.eq.s32.totalorder %s19, 1
    %p58 = por %p56, %p57
    %p59 = scmp.ne.s32.totalorder %s50, %s51
    %p60 = scmp.eq.s32.totalorder %s19, 0
    %p61 = por %p59, %p60
    %p62 = scmp.ne.s32.totalorder %s50, %s51
    %p63 = scmp.eq.s32.totalorder %s20, 1
    %p64 = por %p62, %p63
    %p66 = scmp.ne.s32.totalorder %s51, %s65
    %p67 = scmp.eq.s32.totalorder %s20, 0
    %p68 = por %p66, %p67
    %s70 = sadd.s32 %s69, 1
    %p73 = scmp.eq.s32.totalorder %s14, 1
    %p74 = scmp.ne.s32.totalorder %s69, %s71
    %p75 = scmp.eq.s32.totalorder %s14, 0
    %p76 = por %p74, %p75
    %p77 = scmp.ne.s32.totalorder %s69, %s71
    %p78 = scmp.eq.s32.totalorder %s19, 1
    %p79 = por %p77, %p78
    %p80 = scmp.ne.s32.totalorder %s71, %s72
    %p81 = scmp.eq.s32.totalorder %s19, 0
    %p82 = por %p80, %p81
    %p83 = scmp.ne.s32.totalorder %s71, %s72
    %p84 = scmp.eq.s32.totalorder %s20, 1
    %p85 = por %p83, %p84
    %p87 = scmp.ne.s32.totalorder %s72, %s86
    %p88 = scmp.eq.s32.totalorder %s20, 0
    %p89 = por %p87, %p88
    %s91 = sadd.s32 %s90, 1
    %p94 = scmp.eq.s32.totalorder %s14, 1
    %p95 = scmp.ne.s32.totalorder %s90, %s92
    %p96 = scmp.eq.s32.totalorder %s14, 0
    %p97 = por %p95, %p96
    %p98 = scmp.ne.s32.totalorder %s90, %s92
    %p99 = scmp.eq.s32.totalorder %s19, 1
    %p100 = por %p98, %p99
    %p101 = scmp.ne.s32.totalorder %s92, %s93
    %p102 = scmp.eq.s32.totalorder %s19, 0
    %p103 = por %p101, %p102
    %p104 = scmp.ne.s32.totalorder %s92, %s93
    %p105 = scmp.eq.s32.totalorder %s20, 1
    %p106 = por %p104, %p105
    %p108 = scmp.ne.s32.totalorder %s93, %s107
    %p109 = scmp.eq.s32.totalorder %s20, 0
    %p110 = por %p108, %p109
    %s112 = sadd.s32 %s111, 1
    %p115 = scmp.eq.s32.totalorder %s14, 1
    %p116 = scmp.ne.s32.totalorder %s111, %s113
    %p117 = scmp.eq.s32.totalorder %s14, 0
    %p118 = por %p116, %p117
    %p119 = scmp.ne.s32.totalorder %s111, %s113
    %p120 = scmp.eq.s32.totalorder %s19, 1
    %p121 = por %p119, %p120
    %p122 = scmp.ne.s32.totalorder %s113, %s114
    %p123 = scmp.eq.s32.totalorder %s19, 0
    %p124 = por %p122, %p123
    %p125 = scmp.ne.s32.totalorder %s113, %s114
    %p126 = scmp.eq.s32.totalorder %s20, 1
    %p127 = por %p125, %p126
    %p129 = scmp.ne.s32.totalorder %s114, %s128
    %p130 = scmp.eq.s32.totalorder %s20, 0
    %p131 = por %p129, %p130
    %s133 = sadd.s32 %s132, 1
    %p136 = scmp.eq.s32.totalorder %s14, 1
    %p137 = scmp.ne.s32.totalorder %s132, %s134
    %p138 = scmp.eq.s32.totalorder %s14, 0
    %p139 = por %p137, %p138
    %p140 = scmp.ne.s32.totalorder %s132, %s134
    %p141 = scmp.eq.s32.totalorder %s19, 1
    %p142 = por %p140, %p141
    %p143 = scmp.ne.s32.totalorder %s134, %s135
    %p144 = scmp.eq.s32.totalorder %s19, 0
    %p145 = por %p143, %p144
    %p146 = scmp.ne.s32.totalorder %s134, %s135
    %p147 = scmp.eq.s32.totalorder %s20, 1
    %p148 = por %p146, %p147
    %p150 = scmp.ne.s32.totalorder %s135, %s149
    %p151 = scmp.eq.s32.totalorder %s20, 0
    %p152 = por %p150, %p151
    %s153 = ssub.s32 %s14, %s21
    %p154 = scmp.eq.s32.totalorder %s153, 0
    %s156 = sadd.s32 %s155, 1
    %s157 = scalar_select %p154, %s155, %s156
    %p160 = pneg %p154
    %p161 = scmp.eq.s32.totalorder %s14, 1
    %p162 = por %p160, %p161
    %p163 = scmp.ne.s32.totalorder %s155, %s158
    %p164 = scmp.eq.s32.totalorder %s14, 0
    %p165 = por %p163, %p164
    %p166 = scmp.ne.s32.totalorder %s155, %s158
    %p167 = scmp.eq.s32.totalorder %s19, 1
    %p168 = por %p166, %p167
    %p169 = scmp.ne.s32.totalorder %s158, %s159
    %p170 = scmp.eq.s32.totalorder %s19, 0
    %p171 = por %p169, %p170
    %p172 = scmp.ne.s32.totalorder %s158, %s159
    %p173 = scmp.eq.s32.totalorder %s20, 1
    %p174 = por %p172, %p173
    %p176 = scmp.ne.s32.totalorder %s159, %s175
    %p177 = scmp.eq.s32.totalorder %s20, 0
    %p178 = por %p176, %p177
    %s179 = ssub.s32 %s14, %s21
    %p180 = scmp.eq.s32.totalorder %s179, 0
    %s182 = sadd.s32 %s181, 1
    %s183 = scalar_select %p180, %s181, %s182
    %p186 = pneg %p180
    %p187 = scmp.eq.s32.totalorder %s14, 1
    %p188 = por %p186, %p187
    %p189 = scmp.ne.s32.totalorder %s181, %s184
    %p190 = scmp.eq.s32.totalorder %s14, 0
    %p191 = por %p189, %p190
    %p192 = scmp.ne.s32.totalorder %s181, %s184
    %p193 = scmp.eq.s32.totalorder %s19, 1
    %p194 = por %p192, %p193
    %p195 = scmp.ne.s32.totalorder %s184, %s185
    %p196 = scmp.eq.s32.totalorder %s19, 0
    %p197 = por %p195, %p196
    %p198 = scmp.ne.s32.totalorder %s184, %s185
    %p199 = scmp.eq.s32.totalorder %s20, 1
    %p200 = por %p198, %p199
    %p202 = scmp.ne.s32.totalorder %s185, %s201
    %p203 = scmp.eq.s32.totalorder %s20, 0
    %p204 = por %p202, %p203
    %p205 = scmp.le.s32.totalorder 1, %s14
    %p206 = scmp.lt.s32.totalorder %s14, 3
    %p207 = pnand %p205, %p206
    %p208 = pneg %p207
    // Predicated region
    $region9: #{_lambda_.2} parent=5 // pred_check
      _
    $region10: #{_lambda_.2} parent=5 // pred_check_branch
      %210 = sbr.rel (%p207) target = $region12
    $region11: #{_lambda_.2} parent=5 // pred_region
      %s211 = ssub.s32 %s14, 1
      // Predicated region
      $region13: #{_lambda_.2} parent=11 // pred_check
        %p212 = pneg %p61
      $region14: #{_lambda_.2} parent=11 // pred_check_branch
        %214 = sbr.rel (%p212) target = $region16
      $region15: #{_lambda_.2} parent=11 // pred_region
        _
      $region16: #{_lambda_.2} parent=11 // pred_fallthru
        _
      // Predicated region
      $region17: #{_lambda_.2} parent=11 // pred_check
        %p215 = pneg %p82
      $region18: #{_lambda_.2} parent=11 // pred_check_branch
        %217 = sbr.rel (%p215) target = $region20
      $region19: #{_lambda_.2} parent=11 // pred_region
        _
      $region20: #{_lambda_.2} parent=11 // pred_fallthru
        _
      // Predicated region
      $region21: #{_lambda_.2} parent=11 // pred_check
        %p218 = pneg %p103
      $region22: #{_lambda_.2} parent=11 // pred_check_branch
        %220 = sbr.rel (%p218) target = $region24
      $region23: #{_lambda_.2} parent=11 // pred_region
        _
      $region24: #{_lambda_.2} parent=11 // pred_fallthru
        _
      // Predicated region
      $region25: #{_lambda_.2} parent=11 // pred_check
        %p221 = pneg %p124
      $region26: #{_lambda_.2} parent=11 // pred_check_branch
        %223 = sbr.rel (%p221) target = $region28
      $region27: #{_lambda_.2} parent=11 // pred_region
        _
      $region28: #{_lambda_.2} parent=11 // pred_fallthru
        _
      // Predicated region
      $region29: #{_lambda_.2} parent=11 // pred_check
        %p224 = pneg %p145
      $region30: #{_lambda_.2} parent=11 // pred_check_branch
        %226 = sbr.rel (%p224) target = $region32
      $region31: #{_lambda_.2} parent=11 // pred_region
        _
      $region32: #{_lambda_.2} parent=11 // pred_fallthru
        _
    $region12: #{_lambda_.2} parent=5 // pred_fallthru
      _
    %p227 = scmp.lt.s32.totalorder %s14, 2
    // Predicated region
    $region33: #{_lambda_.2} parent=5 // pred_check
      %p228 = pneg %p227
    $region34: #{_lambda_.2} parent=5 // pred_check_branch
      %230 = sbr.rel (%p228) target = $region36
    $region35: #{_lambda_.2} parent=5 // pred_region
      // Predicated region
      $region37: #{_lambda_.2} parent=35 // pred_check
        %p231 = pneg %p34
      $region38: #{_lambda_.2} parent=35 // pred_check_branch
        %233 = sbr.rel (%p231) target = $region40
      $region39: #{_lambda_.2} parent=35 // pred_region
        %p234 = scmp.lt.s32.totalorder %s14, 1
        %s235 = scalar_select %p234, %s14, 1
        %s236 = smul.addr %s235, 3
        %s237 = smul.addr %s236, 8
        %s238 = scalar_lea.vmem %s0, %s237
      $region40: #{_lambda_.2} parent=35 // pred_fallthru
        _
    $region36: #{_lambda_.2} parent=5 // pred_fallthru
      _
    %p239 = scmp.le.s32.totalorder 1, %s14
    %p240 = scmp.lt.s32.totalorder %s14, 3
    %p241 = pnand %p239, %p240
    %p242 = pneg %p241
    // Predicated region
    $region41: #{_lambda_.2} parent=5 // pred_check
      _
    $region42: #{_lambda_.2} parent=5 // pred_check_branch
      %244 = sbr.rel (%p241) target = $region44
    $region43: #{_lambda_.2} parent=5 // pred_region
      %s245 = ssub.s32 %s14, 1
      %p246 = scmp.lt.s32.totalorder %s19, 1
      %s247 = scalar_select %p246, %s19, 1
      %s248 = smul.addr %s247, 3
      %s249 = smul.addr %s248, 8
      %s250 = scalar_lea.vmem %s0, %s249
      %p251 = pneg %p40
      %p252 = pneg %p37
      %p253 = pneg %p61
      %p254 = pneg %p58
      %p255 = pneg %p82
      %p256 = pneg %p79
      %p257 = pneg %p103
      %p258 = pneg %p100
      %p259 = pneg %p124
      %p260 = pneg %p121
      %p261 = pneg %p145
      %p262 = pneg %p142
      %p263 = pneg %p171
      %p264 = pneg %p168
      %p265 = scmp.lt.s32.totalorder %s19, 1
      %s266 = scalar_select %p265, %s19, 1
      %s267 = smul.addr %s266, 2
      %s268 = smul.addr %s267, 8
      %s269 = scalar_lea.vmem %s6, %s268
      %p270 = pneg %p197
      %p271 = pneg %p194
      %p272 = scmp.lt.s32.totalorder %s19, 1
      %s273 = scalar_select %p272, %s19, 1
      %s274 = smul.addr %s273, 2
      %s275 = smul.addr %s274, 8
      %s276 = scalar_lea.vmem %s7, %s275
      %p277 = scmp.lt.s32.totalorder %s19, 1
      %s278 = scalar_select %p277, %s19, 1
      %s279 = smul.addr %s278, 3
      %s280 = smul.addr %s279, 8
      %s281 = scalar_lea.vmem %s0, %s280
      %p282 = scmp.lt.s32.totalorder %s19, 1
      %s283 = scalar_select %p282, %s19, 1
      %s284 = smul.addr %s283, 2
      %s285 = smul.addr %s284, 8
      %s286 = scalar_lea.vmem %s6, %s285
      %p287 = scmp.lt.s32.totalorder %s19, 1
      %s288 = scalar_select %p287, %s19, 1
      %s289 = smul.addr %s288, 2
      %s290 = smul.addr %s289, 8
      %s291 = scalar_lea.vmem %s7, %s290
      %v293 = vld [vmem:[%s281] sm:$0xff]
      %v294 = vld [vmem:[%s281 + $0x8] sm:$0xff]
      %v295 = vld [vmem:[%s281 + $0x10] sm:$0x1]
      %v296 = vld [vmem:[%s1] sm:$0xff]
      %v297 = vld [vmem:[%s1 + $0x8] sm:$0xff]
      %vm301 = vcmask 1046528
      %v302 = vrot.slane %v293, 1
      %v303 = vrot.slane %v294, 1
      %v304 = vsel %vm301, %v302, %v303
      %v305 = vrot.slane %v295, 1
      %v306 = vsel %vm301, %v303, %v305
      %vm307 = vcmask 64512
      %v308 = vsel %vm307, %v304, 0
      %v310 = vsel %vm307, %v306, 0
      %312 = vmatpush.msra.mxu0 0.0
      %313 = vmatpush.msra.mxu0 0.0
      %314 = vmatpush.msra.mxu0 0.0
      %315 = vmatpush.msra.mxu0 0.0
      %316 = vmatpush.msra.mxu0 0.0
      %317 = vmatpush.msra.mxu0 0.0
      %318 = vmatpush.msra.mxu0 0.0
      %319 = vmatpush.msra.mxu0 0.0
      %320 = vmatpush.msra.mxu0 0.0
      %321 = vmatpush.msra.mxu0 0.0
      %322 = vmatpush.msra.mxu0 0.0
      %323 = vmatpush.msra.mxu0 0.0
      %324 = vmatpush.msra.mxu0 0.0
      %325 = vmatpush.msra.mxu0 0.0
      %326 = vmatpush.msra.mxu0 0.0
      %327 = vmatpush.msra.mxu0 %v297
      %328 = vmatmul.f32.gmra.mxu0 %v308
      %v329 = vpop.f32.mrf.mxu0
      %v330 = vadd.f32 0.0, %v329
      %331 = vmatmul.f32.gmra.mxu0 %v310
      %v332 = vpop.f32.mrf.mxu0
      %v333 = vadd.f32 0.0, %v332
      %334 = vdwg.mxu0
      %v335 = vsel %vm307, %v293, 0
      %v337 = vsel %vm307, %v294, 0
      %339 = vmatpush.msra.mxu0 0.0
      %340 = vmatpush.msra.mxu0 0.0
      %341 = vmatpush.msra.mxu0 0.0
      %342 = vmatpush.msra.mxu0 0.0
      %343 = vmatpush.msra.mxu0 0.0
      %344 = vmatpush.msra.mxu0 0.0
      %345 = vmatpush.msra.mxu0 0.0
      %346 = vmatpush.msra.mxu0 0.0
      %347 = vmatpush.msra.mxu0 0.0
      %348 = vmatpush.msra.mxu0 0.0
      %349 = vmatpush.msra.mxu0 0.0
      %350 = vmatpush.msra.mxu0 0.0
      %351 = vmatpush.msra.mxu0 0.0
      %352 = vmatpush.msra.mxu0 0.0
      %353 = vmatpush.msra.mxu0 0.0
      %354 = vmatpush.msra.mxu0 %v296
      %355 = vmatmul.f32.gmra.mxu0 %v335
      %v356 = vpop.f32.mrf.mxu0
      %v357 = vadd.f32 %v330, %v356
      %358 = vmatmul.f32.gmra.mxu0 %v337
      %v359 = vpop.f32.mrf.mxu0
      %v360 = vadd.f32 %v333, %v359
      %361 = vdwg.mxu0
      %vm362 = vcmask 523264
      %363 = vst.msk [vmem:[%s286] sm:$0xff] %vm362, %v357
      %364 = vst.msk [vmem:[%s286 + $0x8] sm:$0xff] %vm362, %v360
      %v365 = vld [vmem:[%s2] sm:$0x1]
      %v366 = vld [vmem:[%s3] sm:$0x1]
      %v367 = vsel %vm362, %v357, 0.0
      %v368 = vsel %vm362, %v360, 0.0
      %v369 = vadd.f32 %v367, %v368
      %370 = vadd.xlane.f32.xlu0 %v369
      %v371 = vpop.xlane.xlu0 %370
      %v372 = vrot.slane %v371, 4
      %v373 = vadd.f32 %v371, %v372
      %v374 = vrot.slane %v373, 2
      %v375 = vadd.f32 %v373, %v374
      %v376 = vrot.slane %v375, 1
      %v377 = vadd.f32 %v375, %v376
      %s378 = vtos %v377
      %v379 = vmul.f32 %v357, %v357
      %v380 = vmul.f32 %v360, %v360
      %v381 = vsel %vm362, %v379, 0.0
      %v382 = vsel %vm362, %v380, 0.0
      %v383 = vadd.f32 %v381, %v382
      %384 = vadd.xlane.f32.xlu0 %v383
      %v385 = vpop.xlane.xlu0 %384
      %v386 = vrot.slane %v385, 4
      %v387 = vadd.f32 %v385, %v386
      %v388 = vrot.slane %v387, 2
      %v389 = vadd.f32 %v387, %v388
      %v390 = vrot.slane %v389, 1
      %v391 = vadd.f32 %v389, %v390
      %s392 = vtos %v391
      %v393 = vrcp.pop 1024.0
      %v394 = vmul.f32 1024.0, %v393
      %v395 = vsub.f32 1.0, %v394
      %v396 = vmul.f32 %v393, %v395
      %v397 = vadd.f32 %v393, %v396
      %vm398 = vweird.f32 %v393
      %v399 = vsel %vm398, %v393, %v397
      %s400 = vtos %v399
      %s401 = smul.f32 %s378, %s400
      %v402 = vrcp.pop 1024.0
      %v403 = vmul.f32 1024.0, %v402
      %v404 = vsub.f32 1.0, %v403
      %v405 = vmul.f32 %v402, %v404
      %v406 = vadd.f32 %v402, %v405
      %vm407 = vweird.f32 %v402
      %v408 = vsel %vm407, %v402, %v406
      %s409 = vtos %v408
      %s410 = smul.f32 %s392, %s409
      %s411 = smul.f32 %s401, %s401
      %s412 = ssub.f32 %s410, %s411
      %s413 = smax.f32 %s412, 0.0
      %v414 = vstv %s401
      %v415 = vsub.f32 %v357, %v414
      %v416 = vsub.f32 %v360, %v414
      %s417 = sadd.f32 %s413, 1e-08
      %v418 = vstv %s417
      %v419 = vrsqrt.pop %v418
      %v420 = vmul.f32 %v419, %v418
      %v421 = vmul.f32 %v420, %v419
      %v422 = vmul.f32 0.5, %v421
      %v423 = vsub.f32 1.5, %v422
      %v424 = vmul.f32 %v419, %v423
      %vm425 = vweird.f32 %v418
      %vm426 = vweird.f32 %v419
      %vm427 = vmor %vm425, %vm426
      %v428 = vsel %vm427, %v419, %v424
      %s429 = vtos %v428
      %v430 = vstv %s429
      %v431 = vmul.f32 %v415, %v430
      %v432 = vmul.f32 %v416, %v430
      %v434 = vperm.slane %v365, 0
      %v436 = vmul.f32 %v431, %v434
      %v437 = vmul.f32 %v432, %v434
      %v439 = vperm.slane %v366, 0
      %v441 = vadd.f32 %v436, %v439
      %v442 = vadd.f32 %v437, %v439
      %v443 = vpack.c.bf16 %v442, %v441
      %v444 = vld [vmem:[%s4] sm:$0xf]
      %v445 = vld [vmem:[%s4 + $0x4] sm:$0xf]
      %v446 = vld [vmem:[%s4 + $0x8] sm:$0xf]
      %v447 = vld [vmem:[%s4 + $0xc] sm:$0xf]
      %v448 = vld [vmem:[%s4 + $0x10] sm:$0xf]
      %v449 = vld [vmem:[%s4 + $0x14] sm:$0xf]
      %v450 = vld [vmem:[%s4 + $0x18] sm:$0xf]
      %v451 = vld [vmem:[%s4 + $0x1c] sm:$0xf]
      %v452 = vld [vmem:[%s5] sm:$0x1]
      %v454 = vperm.slane %v452, 0
      %v464 = vunpack.c.l.b16 %v444
      %v465 = vunpack.c.l.b16 %v445
      %v466 = vunpack.c.l.b16 %v446
      %v467 = vunpack.c.l.b16 %v447
      %v468 = vunpack.c.l.b16 %v448
      %v469 = vunpack.c.l.b16 %v449
      %v470 = vunpack.c.l.b16 %v450
      %v471 = vunpack.c.l.b16 %v451
      %v472 = vpack.c.b16 %v465, %v464
      %v473 = vpack.c.b16 %v467, %v466
      %v474 = vpack.c.b16 %v469, %v468
      %v475 = vpack.c.b16 %v471, %v470
      %v481 = vsel %vm362, %v443, 0
      %483 = vmatpush.bf16.msra.mxu0 0
      %484 = vmatpush.bf16.msra.mxu0 0
      %485 = vmatpush.bf16.msra.mxu0 0
      %486 = vmatpush.bf16.msra.mxu0 0
      %487 = vmatpush.bf16.msra.mxu0 %v475
      %488 = vmatpush.bf16.msra.mxu0 %v474
      %489 = vmatpush.bf16.msra.mxu0 %v473
      %490 = vmatpush.bf16.msra.mxu0 %v472
      %491 = vmatmul.bf16.gmra.mxu0 %v481
      %v492 = vpop.f32.mrf.mxu0
      %v493 = vadd.f32 %v454, %v492
      %v494 = vpop.f32.mrf.mxu0
      %v495 = vadd.f32 %v454, %v494
      %496 = vdwg.mxu0
      %vm497 = vcmask 261120
      %498 = vst.msk [vmem:[%s291] sm:$0xff] %vm497, %v493
      %499 = vst.msk [vmem:[%s291 + $0x8] sm:$0xff] %vm497, %v495
      %p500 = scmp.lt.s32.totalorder %s19, 1
      %s501 = scalar_select %p500, %s19, 1
      %s502 = smul.addr %s501, 2
      %s503 = smul.addr %s502, 8
      %s504 = scalar_lea.vmem %s6, %s503
      %p505 = scmp.lt.s32.totalorder %s19, 1
      %s506 = scalar_select %p505, %s19, 1
      %s507 = smul.addr %s506, 2
      %s508 = smul.addr %s507, 8
      %s509 = scalar_lea.vmem %s7, %s508
      // Predicated region
      $region45: #{_lambda_.2} parent=43 // pred_check
        %p510 = pneg %p168
      $region46: #{_lambda_.2} parent=43 // pred_check_branch
        %512 = sbr.rel (%p510) target = $region48
      $region47: #{_lambda_.2} parent=43 // pred_region
        _
      $region48: #{_lambda_.2} parent=43 // pred_fallthru
        _
      // Predicated region
      $region49: #{_lambda_.2} parent=43 // pred_check
        %p513 = pneg %p194
      $region50: #{_lambda_.2} parent=43 // pred_check_branch
        %515 = sbr.rel (%p513) target = $region52
      $region51: #{_lambda_.2} parent=43 // pred_region
        _
      $region52: #{_lambda_.2} parent=43 // pred_fallthru
        _
    $region44: #{_lambda_.2} parent=5 // pred_fallthru
      _
    %p516 = scmp.le.s32.totalorder 2, %s14
    // Predicated region
    $region53: #{_lambda_.2} parent=5 // pred_check
      %p517 = pneg %p516
    $region54: #{_lambda_.2} parent=5 // pred_check_branch
      %519 = sbr.rel (%p517) target = $region56
    $region55: #{_lambda_.2} parent=5 // pred_region
      %s520 = ssub.s32 %s14, 2
      // Predicated region
      $region57: #{_lambda_.2} parent=55 // pred_check
        %p521 = pneg %p174
      $region58: #{_lambda_.2} parent=55 // pred_check_branch
        %523 = sbr.rel (%p521) target = $region60
      $region59: #{_lambda_.2} parent=55 // pred_region
        %p524 = scmp.lt.s32.totalorder %s20, 1
        %s525 = scalar_select %p524, %s20, 1
        %s526 = smul.addr %s525, 2
        %s527 = smul.addr %s526, 8
        %s528 = scalar_lea.vmem %s6, %s527
      $region60: #{_lambda_.2} parent=55 // pred_fallthru
        _
      // Predicated region
      $region61: #{_lambda_.2} parent=55 // pred_check
        %p529 = pneg %p200
      $region62: #{_lambda_.2} parent=55 // pred_check_branch
        %531 = sbr.rel (%p529) target = $region64
      $region63: #{_lambda_.2} parent=55 // pred_region
        %p532 = scmp.lt.s32.totalorder %s20, 1
        %s533 = scalar_select %p532, %s20, 1
        %s534 = smul.addr %s533, 2
        %s535 = smul.addr %s534, 8
        %s536 = scalar_lea.vmem %s7, %s535
      $region64: #{_lambda_.2} parent=55 // pred_fallthru
        _
    $region56: #{_lambda_.2} parent=5 // pred_fallthru
      _
  $region6: #{_lambda_.2} parent=0 // loop_footer
    %s18 = sadd.s32 1, %s14
  $region7: #{_lambda_.2} parent=0 // loop_footer_branch
    %13 = sbr.rel target = $region3
  $region8: #{_lambda_.2} parent=0 // loop_exit
    _

// kernel: _lambda_.3
$region0: #{_lambda_.3}
  #allocation0 [shape = 'u32[]', space=smem, size = 0x4, offset = 0x4, fixed_abs, tag = 'smem constant byte address 0x4 - core index']
  #allocation1 [shape = 'u32[72,128]{1,0:T(1,128)}', space=vmem, size = 0x9000, scoped, tag = 'internal scratch']
  #allocation2 [shape = 'f32[16,32]{1,0:T(8,128)}', space=vmem, size = 0x2000, scoped, tag = 'scratch operand']
  #allocation3 [shape = 'f32[16,32]{1,0:T(8,128)}', space=vmem, size = 0x2000, scoped, tag = 'scratch operand']
  #allocation4 [shape = 'f32[32,64]{1,0:T(8,128)}', space=vmem, size = 0x4000, scoped, tag = 'scratch operand']
  #allocation5 [shape = 's32[1]{0}', space=sflag, size = 0x4, scoped, tag = 'scoped memory for _lambda_.3']
  #allocation6 [shape = 'u8[512]{0}', space=smem, size = 0x200, scoped, tag = 'prefetched SMEM operand 0']
  %s0 = inlined_call_operand.vmem [shape: s32[4], index: 0, kind: input, shape index: {}]
  %s1 = inlined_call_operand.vmem [shape: f32[2,16,32], index: 1, kind: input, shape index: {}]
  %s2 = inlined_call_operand.vmem [shape: f32[2,16,64], index: 2, kind: input, shape index: {}]
  %s3 = inlined_call_operand.vmem [shape: f32[4,1,32], index: 3, kind: input, shape index: {}]
  %s4 = inlined_call_operand.vmem [shape: bf16[4,32,64], index: 4, kind: input, shape index: {}]
  %s5 = inlined_call_operand.vmem [shape: f32[4,9,64], index: 5, kind: input, shape index: {}]
  %s6 = inlined_call_operand.vmem [shape: bf16[4,64,64], index: 6, kind: input, shape index: {}]
  %s7 = inlined_call_operand.vmem [shape: f32[4,1,64], index: 7, kind: input, shape index: {}]
  %s8 = inlined_call_operand.vmem [shape: bf16[32,64], index: 8, kind: input, shape index: {}]
  %s9 = inlined_call_operand.vmem [shape: f32[1,64], index: 9, kind: input, shape index: {}]
  %s10 = inlined_call_operand.vmem [shape: bf16[64,8], index: 10, kind: input, shape index: {}]
  %s11 = inlined_call_operand.vmem [shape: bf16[64,8], index: 11, kind: input, shape index: {}]
  %s12 = inlined_call_operand.vmem [shape: f32[4,17,8], index: 12, kind: output, shape index: {}]
  %s13 = sld [smem:[#allocation0]]
  $region85: #{_lambda_.3} parent=0
    _
  %s15 = ssub.s32 1, %s13
  %s16 = scalar_select 0, %s15, %s13
  %s18 = sshll.u32 %s0, 4
  %s19 = int_to_ptr.vmem [resolvable:$true] %s18
  %21 = dma.vmem_to_smem %s19, 16, [#allocation6], [#allocation5]
  %23 = dma.done [#allocation5], 16
  %24 = sfence
  loop: start=0, step=1, limit=18
  $region2: #{_lambda_.3} parent=0 // loop_pre_header
    _
  $region3: #{_lambda_.3} parent=0 // loop_header
    %s26 = sphi 0, %s30
    %p27 = scmp.ge.s32.totalorder %s26, 18
    %s33 = sphi 0, %s45
    %s34 = sphi 0, %s41
    %s35 = sphi 0, %s33
    %s36 = sphi 0, %s34
    %s37 = sphi 0, %s35
    %s38 = sphi 0, %s36
    %s72 = sphi 0, %s74
    %s75 = sphi 0, %s72
    %s76 = sphi 0, %s75
    %s92 = sphi 0, %s76
    %s122 = sphi 0, %s124
    %s125 = sphi 0, %s122
    %s126 = sphi 0, %s125
    %s142 = sphi 0, %s126
    %s148 = sphi 0, %s150
    %s151 = sphi 0, %s148
    %s152 = sphi 0, %s151
    %s168 = sphi 0, %s152
    %s174 = sphi 0, %s176
    %s177 = sphi 0, %s174
    %s178 = sphi 0, %s177
    %s194 = sphi 0, %s178
    %s200 = sphi 0, %s202
    %s203 = sphi 0, %s200
    %s204 = sphi 0, %s203
    %s220 = sphi 0, %s204
    %s226 = sphi 0, %s228
    %s229 = sphi 0, %s226
    %s230 = sphi 0, %s229
    %s246 = sphi 0, %s230
    %s252 = sphi 0, %s254
    %s255 = sphi 0, %s252
    %s256 = sphi 0, %s255
    %s272 = sphi 0, %s256
    %s276 = sphi 0, %s276
    %s278 = sphi 0, %s276
    %s279 = sphi 0, %s278
    %s293 = sphi 0, %s279
    %s297 = sphi 0, %s297
    %s299 = sphi 0, %s297
    %s300 = sphi 0, %s299
    %s314 = sphi 0, %s300
    %s318 = sphi 0, %s318
    %s320 = sphi 0, %s318
    %s321 = sphi 0, %s320
    %s335 = sphi 0, %s321
    %s339 = sphi 0, %s339
    %s341 = sphi 0, %s339
    %s342 = sphi 0, %s341
    %s356 = sphi 0, %s342
    %s362 = sphi 0, %s364
    %s365 = sphi 0, %s362
    %s366 = sphi 0, %s365
    %s382 = sphi 0, %s366
  $region4: #{_lambda_.3} parent=0 // loop_header_branch
    %29 = sbr.rel (%p27) target = $region8
  $region5: #{_lambda_.3} parent=0 // loop_body
    %s31 = ssub.s32 %s26, 1
    %s32 = ssub.s32 %s26, 2
    %s39 = sadd.s32 1, %s34
    %p40 = scmp.ge.s32.totalorder %s39, 4
    %s41 = scalar_select %p40, 0, %s39
    %s42 = sadd.s32 1, %s33
    %s43 = scalar_select %p40, %s42, %s33
    %p44 = scmp.ge.s32.totalorder %s43, 4
    %s45 = scalar_select %p44, 0, %s43
    %p46 = scmp.lt.s32.totalorder %s33, 0
    %s47 = ssub.s32 0, %s33
    %s48 = scalar_select %p46, %s47, %s33
    %s49 = sand.u32 %s48, 1
    %s50 = ssub.s32 0, %s49
    %s51 = scalar_select %p46, %s50, %s49
    %p52 = scmp.ne.s32.totalorder %s51, 0
    %p53 = scmp.lt.s32.totalorder %s51, 0
    %p54 = pnand %p53, %p52
    %p55 = pneg %p54
    %s56 = sadd.s32 %s51, 2
    %s57 = scalar_select %p55, %s56, %s51
    %p58 = scmp.lt.s32.totalorder %s45, 0
    %s59 = ssub.s32 0, %s45
    %s60 = scalar_select %p58, %s59, %s45
    %s61 = sand.u32 %s60, 1
    %s62 = ssub.s32 0, %s61
    %s63 = scalar_select %p58, %s62, %s61
    %p64 = scmp.ne.s32.totalorder %s63, 0
    %p65 = scmp.lt.s32.totalorder %s63, 0
    %p66 = pnand %p65, %p64
    %p67 = pneg %p66
    %s68 = sadd.s32 %s63, 2
    %s69 = scalar_select %p67, %s68, %s63
    %s70 = ssub.s32 %s57, %s69
    %p71 = scmp.eq.s32.totalorder %s70, 0
    %s73 = sadd.s32 %s72, 1
    %s74 = scalar_select %p71, %s72, %s73
    %p77 = pneg %p71
    %p78 = scmp.eq.s32.totalorder %s26, 15
    %p79 = por %p77, %p78
    %p80 = scmp.ne.s32.totalorder %s72, %s75
    %p81 = scmp.eq.s32.totalorder %s26, 0
    %p82 = por %p80, %p81
    %p83 = scmp.ne.s32.totalorder %s72, %s75
    %p84 = scmp.eq.s32.totalorder %s31, 15
    %p85 = por %p83, %p84
    %p86 = scmp.ne.s32.totalorder %s75, %s76
    %p87 = scmp.eq.s32.totalorder %s31, 0
    %p88 = por %p86, %p87
    %p89 = scmp.ne.s32.totalorder %s75, %s76
    %p90 = scmp.eq.s32.totalorder %s32, 15
    %p91 = por %p89, %p90
    %p93 = scmp.ne.s32.totalorder %s76, %s92
    %p94 = scmp.eq.s32.totalorder %s32, 0
    %p95 = por %p93, %p94
    %p96 = scmp.lt.s32.totalorder %s33, 0
    %s97 = ssub.s32 0, %s33
    %s98 = scalar_select %p96, %s97, %s33
    %s99 = sand.u32 %s98, 1
    %s100 = ssub.s32 0, %s99
    %s101 = scalar_select %p96, %s100, %s99
    %p102 = scmp.ne.s32.totalorder %s101, 0
    %p103 = scmp.lt.s32.totalorder %s101, 0
    %p104 = pnand %p103, %p102
    %p105 = pneg %p104
    %s106 = sadd.s32 %s101, 2
    %s107 = scalar_select %p105, %s106, %s101
    %p108 = scmp.lt.s32.totalorder %s45, 0
    %s109 = ssub.s32 0, %s45
    %s110 = scalar_select %p108, %s109, %s45
    %s111 = sand.u32 %s110, 1
    %s112 = ssub.s32 0, %s111
    %s113 = scalar_select %p108, %s112, %s111
    %p114 = scmp.ne.s32.totalorder %s113, 0
    %p115 = scmp.lt.s32.totalorder %s113, 0
    %p116 = pnand %p115, %p114
    %p117 = pneg %p116
    %s118 = sadd.s32 %s113, 2
    %s119 = scalar_select %p117, %s118, %s113
    %s120 = ssub.s32 %s107, %s119
    %p121 = scmp.eq.s32.totalorder %s120, 0
    %s123 = sadd.s32 %s122, 1
    %s124 = scalar_select %p121, %s122, %s123
    %p127 = pneg %p121
    %p128 = scmp.eq.s32.totalorder %s26, 15
    %p129 = por %p127, %p128
    %p130 = scmp.ne.s32.totalorder %s122, %s125
    %p131 = scmp.eq.s32.totalorder %s26, 0
    %p132 = por %p130, %p131
    %p133 = scmp.ne.s32.totalorder %s122, %s125
    %p134 = scmp.eq.s32.totalorder %s31, 15
    %p135 = por %p133, %p134
    %p136 = scmp.ne.s32.totalorder %s125, %s126
    %p137 = scmp.eq.s32.totalorder %s31, 0
    %p138 = por %p136, %p137
    %p139 = scmp.ne.s32.totalorder %s125, %s126
    %p140 = scmp.eq.s32.totalorder %s32, 15
    %p141 = por %p139, %p140
    %p143 = scmp.ne.s32.totalorder %s126, %s142
    %p144 = scmp.eq.s32.totalorder %s32, 0
    %p145 = por %p143, %p144
    %s146 = ssub.s32 %s33, %s45
    %p147 = scmp.eq.s32.totalorder %s146, 0
    %s149 = sadd.s32 %s148, 1
    %s150 = scalar_select %p147, %s148, %s149
    %p153 = pneg %p147
    %p154 = scmp.eq.s32.totalorder %s26, 15
    %p155 = por %p153, %p154
    %p156 = scmp.ne.s32.totalorder %s148, %s151
    %p157 = scmp.eq.s32.totalorder %s26, 0
    %p158 = por %p156, %p157
    %p159 = scmp.ne.s32.totalorder %s148, %s151
    %p160 = scmp.eq.s32.totalorder %s31, 15
    %p161 = por %p159, %p160
    %p162 = scmp.ne.s32.totalorder %s151, %s152
    %p163 = scmp.eq.s32.totalorder %s31, 0
    %p164 = por %p162, %p163
    %p165 = scmp.ne.s32.totalorder %s151, %s152
    %p166 = scmp.eq.s32.totalorder %s32, 15
    %p167 = por %p165, %p166
    %p169 = scmp.ne.s32.totalorder %s152, %s168
    %p170 = scmp.eq.s32.totalorder %s32, 0
    %p171 = por %p169, %p170
    %s172 = ssub.s32 %s34, %s41
    %p173 = scmp.eq.s32.totalorder %s172, 0
    %s175 = sadd.s32 %s174, 1
    %s176 = scalar_select %p173, %s174, %s175
    %p179 = pneg %p173
    %p180 = scmp.eq.s32.totalorder %s26, 15
    %p181 = por %p179, %p180
    %p182 = scmp.ne.s32.totalorder %s174, %s177
    %p183 = scmp.eq.s32.totalorder %s26, 0
    %p184 = por %p182, %p183
    %p185 = scmp.ne.s32.totalorder %s174, %s177
    %p186 = scmp.eq.s32.totalorder %s31, 15
    %p187 = por %p185, %p186
    %p188 = scmp.ne.s32.totalorder %s177, %s178
    %p189 = scmp.eq.s32.totalorder %s31, 0
    %p190 = por %p188, %p189
    %p191 = scmp.ne.s32.totalorder %s177, %s178
    %p192 = scmp.eq.s32.totalorder %s32, 15
    %p193 = por %p191, %p192
    %p195 = scmp.ne.s32.totalorder %s178, %s194
    %p196 = scmp.eq.s32.totalorder %s32, 0
    %p197 = por %p195, %p196
    %s198 = ssub.s32 %s34, %s41
    %p199 = scmp.eq.s32.totalorder %s198, 0
    %s201 = sadd.s32 %s200, 1
    %s202 = scalar_select %p199, %s200, %s201
    %p205 = pneg %p199
    %p206 = scmp.eq.s32.totalorder %s26, 15
    %p207 = por %p205, %p206
    %p208 = scmp.ne.s32.totalorder %s200, %s203
    %p209 = scmp.eq.s32.totalorder %s26, 0
    %p210 = por %p208, %p209
    %p211 = scmp.ne.s32.totalorder %s200, %s203
    %p212 = scmp.eq.s32.totalorder %s31, 15
    %p213 = por %p211, %p212
    %p214 = scmp.ne.s32.totalorder %s203, %s204
    %p215 = scmp.eq.s32.totalorder %s31, 0
    %p216 = por %p214, %p215
    %p217 = scmp.ne.s32.totalorder %s203, %s204
    %p218 = scmp.eq.s32.totalorder %s32, 15
    %p219 = por %p217, %p218
    %p221 = scmp.ne.s32.totalorder %s204, %s220
    %p222 = scmp.eq.s32.totalorder %s32, 0
    %p223 = por %p221, %p222
    %s224 = ssub.s32 %s34, %s41
    %p225 = scmp.eq.s32.totalorder %s224, 0
    %s227 = sadd.s32 %s226, 1
    %s228 = scalar_select %p225, %s226, %s227
    %p231 = pneg %p225
    %p232 = scmp.eq.s32.totalorder %s26, 15
    %p233 = por %p231, %p232
    %p234 = scmp.ne.s32.totalorder %s226, %s229
    %p235 = scmp.eq.s32.totalorder %s26, 0
    %p236 = por %p234, %p235
    %p237 = scmp.ne.s32.totalorder %s226, %s229
    %p238 = scmp.eq.s32.totalorder %s31, 15
    %p239 = por %p237, %p238
    %p240 = scmp.ne.s32.totalorder %s229, %s230
    %p241 = scmp.eq.s32.totalorder %s31, 0
    %p242 = por %p240, %p241
    %p243 = scmp.ne.s32.totalorder %s229, %s230
    %p244 = scmp.eq.s32.totalorder %s32, 15
    %p245 = por %p243, %p244
    %p247 = scmp.ne.s32.totalorder %s230, %s246
    %p248 = scmp.eq.s32.totalorder %s32, 0
    %p249 = por %p247, %p248
    %s250 = ssub.s32 %s34, %s41
    %p251 = scmp.eq.s32.totalorder %s250, 0
    %s253 = sadd.s32 %s252, 1
    %s254 = scalar_select %p251, %s252, %s253
    %p257 = pneg %p251
    %p258 = scmp.eq.s32.totalorder %s26, 15
    %p259 = por %p257, %p258
    %p260 = scmp.ne.s32.totalorder %s252, %s255
    %p261 = scmp.eq.s32.totalorder %s26, 0
    %p262 = por %p260, %p261
    %p263 = scmp.ne.s32.totalorder %s252, %s255
    %p264 = scmp.eq.s32.totalorder %s31, 15
    %p265 = por %p263, %p264
    %p266 = scmp.ne.s32.totalorder %s255, %s256
    %p267 = scmp.eq.s32.totalorder %s31, 0
    %p268 = por %p266, %p267
    %p269 = scmp.ne.s32.totalorder %s255, %s256
    %p270 = scmp.eq.s32.totalorder %s32, 15
    %p271 = por %p269, %p270
    %p273 = scmp.ne.s32.totalorder %s256, %s272
    %p274 = scmp.eq.s32.totalorder %s32, 0
    %p275 = por %p273, %p274
    %s277 = sadd.s32 %s276, 1
    %p280 = scmp.eq.s32.totalorder %s26, 15
    %p281 = scmp.ne.s32.totalorder %s276, %s278
    %p282 = scmp.eq.s32.totalorder %s26, 0
    %p283 = por %p281, %p282
    %p284 = scmp.ne.s32.totalorder %s276, %s278
    %p285 = scmp.eq.s32.totalorder %s31, 15
    %p286 = por %p284, %p285
    %p287 = scmp.ne.s32.totalorder %s278, %s279
    %p288 = scmp.eq.s32.totalorder %s31, 0
    %p289 = por %p287, %p288
    %p290 = scmp.ne.s32.totalorder %s278, %s279
    %p291 = scmp.eq.s32.totalorder %s32, 15
    %p292 = por %p290, %p291
    %p294 = scmp.ne.s32.totalorder %s279, %s293
    %p295 = scmp.eq.s32.totalorder %s32, 0
    %p296 = por %p294, %p295
    %s298 = sadd.s32 %s297, 1
    %p301 = scmp.eq.s32.totalorder %s26, 15
    %p302 = scmp.ne.s32.totalorder %s297, %s299
    %p303 = scmp.eq.s32.totalorder %s26, 0
    %p304 = por %p302, %p303
    %p305 = scmp.ne.s32.totalorder %s297, %s299
    %p306 = scmp.eq.s32.totalorder %s31, 15
    %p307 = por %p305, %p306
    %p308 = scmp.ne.s32.totalorder %s299, %s300
    %p309 = scmp.eq.s32.totalorder %s31, 0
    %p310 = por %p308, %p309
    %p311 = scmp.ne.s32.totalorder %s299, %s300
    %p312 = scmp.eq.s32.totalorder %s32, 15
    %p313 = por %p311, %p312
    %p315 = scmp.ne.s32.totalorder %s300, %s314
    %p316 = scmp.eq.s32.totalorder %s32, 0
    %p317 = por %p315, %p316
    %s319 = sadd.s32 %s318, 1
    %p322 = scmp.eq.s32.totalorder %s26, 15
    %p323 = scmp.ne.s32.totalorder %s318, %s320
    %p324 = scmp.eq.s32.totalorder %s26, 0
    %p325 = por %p323, %p324
    %p326 = scmp.ne.s32.totalorder %s318, %s320
    %p327 = scmp.eq.s32.totalorder %s31, 15
    %p328 = por %p326, %p327
    %p329 = scmp.ne.s32.totalorder %s320, %s321
    %p330 = scmp.eq.s32.totalorder %s31, 0
    %p331 = por %p329, %p330
    %p332 = scmp.ne.s32.totalorder %s320, %s321
    %p333 = scmp.eq.s32.totalorder %s32, 15
    %p334 = por %p332, %p333
    %p336 = scmp.ne.s32.totalorder %s321, %s335
    %p337 = scmp.eq.s32.totalorder %s32, 0
    %p338 = por %p336, %p337
    %s340 = sadd.s32 %s339, 1
    %p343 = scmp.eq.s32.totalorder %s26, 15
    %p344 = scmp.ne.s32.totalorder %s339, %s341
    %p345 = scmp.eq.s32.totalorder %s26, 0
    %p346 = por %p344, %p345
    %p347 = scmp.ne.s32.totalorder %s339, %s341
    %p348 = scmp.eq.s32.totalorder %s31, 15
    %p349 = por %p347, %p348
    %p350 = scmp.ne.s32.totalorder %s341, %s342
    %p351 = scmp.eq.s32.totalorder %s31, 0
    %p352 = por %p350, %p351
    %p353 = scmp.ne.s32.totalorder %s341, %s342
    %p354 = scmp.eq.s32.totalorder %s32, 15
    %p355 = por %p353, %p354
    %p357 = scmp.ne.s32.totalorder %s342, %s356
    %p358 = scmp.eq.s32.totalorder %s32, 0
    %p359 = por %p357, %p358
    %s360 = ssub.s32 %s33, %s45
    %p361 = scmp.eq.s32.totalorder %s360, 0
    %s363 = sadd.s32 %s362, 1
    %s364 = scalar_select %p361, %s362, %s363
    %p367 = pneg %p361
    %p368 = scmp.eq.s32.totalorder %s26, 15
    %p369 = por %p367, %p368
    %p370 = scmp.ne.s32.totalorder %s362, %s365
    %p371 = scmp.eq.s32.totalorder %s26, 0
    %p372 = por %p370, %p371
    %p373 = scmp.ne.s32.totalorder %s362, %s365
    %p374 = scmp.eq.s32.totalorder %s31, 15
    %p375 = por %p373, %p374
    %p376 = scmp.ne.s32.totalorder %s365, %s366
    %p377 = scmp.eq.s32.totalorder %s31, 0
    %p378 = por %p376, %p377
    %p379 = scmp.ne.s32.totalorder %s365, %s366
    %p380 = scmp.eq.s32.totalorder %s32, 15
    %p381 = por %p379, %p380
    %p383 = scmp.ne.s32.totalorder %s366, %s382
    %p384 = scmp.eq.s32.totalorder %s32, 0
    %p385 = por %p383, %p384
    %p386 = scmp.le.s32.totalorder 1, %s26
    %p387 = scmp.lt.s32.totalorder %s26, 17
    %p388 = pnand %p386, %p387
    %p389 = pneg %p388
    // Predicated region
    $region9: #{_lambda_.3} parent=5 // pred_check
      _
    $region10: #{_lambda_.3} parent=5 // pred_check_branch
      %391 = sbr.rel (%p388) target = $region12
    $region11: #{_lambda_.3} parent=5 // pred_region
      %s392 = ssub.s32 %s26, 1
      // Predicated region
      $region13: #{_lambda_.3} parent=11 // pred_check
        %p393 = pneg %p289
      $region14: #{_lambda_.3} parent=11 // pred_check_branch
        %395 = sbr.rel (%p393) target = $region16
      $region15: #{_lambda_.3} parent=11 // pred_region
        _
      $region16: #{_lambda_.3} parent=11 // pred_fallthru
        _
      // Predicated region
      $region17: #{_lambda_.3} parent=11 // pred_check
        %p396 = pneg %p310
      $region18: #{_lambda_.3} parent=11 // pred_check_branch
        %398 = sbr.rel (%p396) target = $region20
      $region19: #{_lambda_.3} parent=11 // pred_region
        _
      $region20: #{_lambda_.3} parent=11 // pred_fallthru
        _
      // Predicated region
      $region21: #{_lambda_.3} parent=11 // pred_check
        %p399 = pneg %p331
      $region22: #{_lambda_.3} parent=11 // pred_check_branch
        %401 = sbr.rel (%p399) target = $region24
      $region23: #{_lambda_.3} parent=11 // pred_region
        _
      $region24: #{_lambda_.3} parent=11 // pred_fallthru
        _
      // Predicated region
      $region25: #{_lambda_.3} parent=11 // pred_check
        %p402 = pneg %p352
      $region26: #{_lambda_.3} parent=11 // pred_check_branch
        %404 = sbr.rel (%p402) target = $region28
      $region27: #{_lambda_.3} parent=11 // pred_region
        _
      $region28: #{_lambda_.3} parent=11 // pred_fallthru
        _
    $region12: #{_lambda_.3} parent=5 // pred_fallthru
      _
    %p405 = scmp.lt.s32.totalorder %s26, 16
    // Predicated region
    $region29: #{_lambda_.3} parent=5 // pred_check
      %p406 = pneg %p405
    $region30: #{_lambda_.3} parent=5 // pred_check_branch
      %408 = sbr.rel (%p406) target = $region32
    $region31: #{_lambda_.3} parent=5 // pred_region
      // Predicated region
      $region33: #{_lambda_.3} parent=31 // pred_check
        %p409 = pneg %p82
      $region34: #{_lambda_.3} parent=31 // pred_check_branch
        %411 = sbr.rel (%p409) target = $region36
      $region35: #{_lambda_.3} parent=31 // pred_region
        %p412 = scmp.lt.s32.totalorder %s33, 0
        %s413 = ssub.s32 0, %s33
        %s414 = scalar_select %p412, %s413, %s33
        %s415 = sand.u32 %s414, 1
        %s416 = ssub.s32 0, %s415
        %s417 = scalar_select %p412, %s416, %s415
        %p418 = scmp.ne.s32.totalorder %s417, 0
        %p419 = scmp.lt.s32.totalorder %s417, 0
        %p420 = pnand %p419, %p418
        %p421 = pneg %p420
        %s422 = sadd.s32 %s417, 2
        %s423 = scalar_select %p421, %s422, %s417
        %p424 = scmp.lt.s32.totalorder %s423, 1
        %s425 = scalar_select %p424, %s423, 1
        %s426 = smul.addr %s425, 2
        %s427 = smul.addr %s426, 8
        %s428 = scalar_lea.vmem %s1, %s427
        %p429 = scmp.lt.s32.totalorder %s33, 0
        %s430 = ssub.s32 0, %s33
        %s431 = scalar_select %p429, %s430, %s33
        %s432 = sand.u32 %s431, 1
        %s433 = ssub.s32 0, %s432
        %s434 = scalar_select %p429, %s433, %s432
        %p435 = scmp.ne.s32.totalorder %s434, 0
        %p436 = scmp.lt.s32.totalorder %s434, 0
        %p437 = pnand %p436, %p435
        %p438 = pneg %p437
        %s439 = sadd.s32 %s434, 2
        %s440 = scalar_select %p438, %s439, %s434
      $region36: #{_lambda_.3} parent=31 // pred_fallthru
        _
      // Predicated region
      $region37: #{_lambda_.3} parent=31 // pred_check
        %p441 = pneg %p132
      $region38: #{_lambda_.3} parent=31 // pred_check_branch
        %443 = sbr.rel (%p441) target = $region40
      $region39: #{_lambda_.3} parent=31 // pred_region
        %p444 = scmp.lt.s32.totalorder %s33, 0
        %s445 = ssub.s32 0, %s33
        %s446 = scalar_select %p444, %s445, %s33
        %s447 = sand.u32 %s446, 1
        %s448 = ssub.s32 0, %s447
        %s449 = scalar_select %p444, %s448, %s447
        %p450 = scmp.ne.s32.totalorder %s449, 0
        %p451 = scmp.lt.s32.totalorder %s449, 0
        %p452 = pnand %p451, %p450
        %p453 = pneg %p452
        %s454 = sadd.s32 %s449, 2
        %s455 = scalar_select %p453, %s454, %s449
        %p456 = scmp.lt.s32.totalorder %s455, 1
        %s457 = scalar_select %p456, %s455, 1
        %s458 = smul.addr %s457, 2
        %s459 = smul.addr %s458, 8
        %s460 = scalar_lea.vmem %s2, %s459
        %p461 = scmp.lt.s32.totalorder %s33, 0
        %s462 = ssub.s32 0, %s33
        %s463 = scalar_select %p461, %s462, %s33
        %s464 = sand.u32 %s463, 1
        %s465 = ssub.s32 0, %s464
        %s466 = scalar_select %p461, %s465, %s464
        %p467 = scmp.ne.s32.totalorder %s466, 0
        %p468 = scmp.lt.s32.totalorder %s466, 0
        %p469 = pnand %p468, %p467
        %p470 = pneg %p469
        %s471 = sadd.s32 %s466, 2
        %s472 = scalar_select %p470, %s471, %s466
      $region40: #{_lambda_.3} parent=31 // pred_fallthru
        _
      // Predicated region
      $region41: #{_lambda_.3} parent=31 // pred_check
        %p473 = pneg %p158
      $region42: #{_lambda_.3} parent=31 // pred_check_branch
        %475 = sbr.rel (%p473) target = $region44
      $region43: #{_lambda_.3} parent=31 // pred_region
        %p476 = scmp.lt.s32.totalorder %s33, 3
        %s477 = scalar_select %p476, %s33, 3
        %s478 = scalar_lea.vmem %s3, %s477
      $region44: #{_lambda_.3} parent=31 // pred_fallthru
        _
      // Predicated region
      $region45: #{_lambda_.3} parent=31 // pred_check
        %p479 = pneg %p184
      $region46: #{_lambda_.3} parent=31 // pred_check_branch
        %481 = sbr.rel (%p479) target = $region48
      $region47: #{_lambda_.3} parent=31 // pred_region
        %p482 = scmp.lt.s32.totalorder %s34, 3
        %s483 = scalar_select %p482, %s34, 3
        %s484 = smul.addr %s483, 4
        %s485 = smul.addr %s484, 4
        %s486 = scalar_lea.vmem %s4, %s485
      $region48: #{_lambda_.3} parent=31 // pred_fallthru
        _
      // Predicated region
      $region49: #{_lambda_.3} parent=31 // pred_check
        %p487 = pneg %p210
      $region50: #{_lambda_.3} parent=31 // pred_check_branch
        %489 = sbr.rel (%p487) target = $region52
      $region51: #{_lambda_.3} parent=31 // pred_region
        %p490 = scmp.lt.s32.totalorder %s34, 3
        %s491 = scalar_select %p490, %s34, 3
        %s492 = smul.addr %s491, 2
        %s493 = smul.addr %s492, 8
        %s494 = scalar_lea.vmem %s5, %s493
      $region52: #{_lambda_.3} parent=31 // pred_fallthru
        _
      // Predicated region
      $region53: #{_lambda_.3} parent=31 // pred_check
        %p495 = pneg %p236
      $region54: #{_lambda_.3} parent=31 // pred_check_branch
        %497 = sbr.rel (%p495) target = $region56
      $region55: #{_lambda_.3} parent=31 // pred_region
        %p498 = scmp.lt.s32.totalorder %s34, 3
        %s499 = scalar_select %p498, %s34, 3
        %s500 = smul.addr %s499, 8
        %s501 = smul.addr %s500, 4
        %s502 = scalar_lea.vmem %s6, %s501
      $region56: #{_lambda_.3} parent=31 // pred_fallthru
        _
      // Predicated region
      $region57: #{_lambda_.3} parent=31 // pred_check
        %p503 = pneg %p262
      $region58: #{_lambda_.3} parent=31 // pred_check_branch
        %505 = sbr.rel (%p503) target = $region60
      $region59: #{_lambda_.3} parent=31 // pred_region
        %p506 = scmp.lt.s32.totalorder %s34, 3
        %s507 = scalar_select %p506, %s34, 3
        %s508 = scalar_lea.vmem %s7, %s507
      $region60: #{_lambda_.3} parent=31 // pred_fallthru
        _
    $region32: #{_lambda_.3} parent=5 // pred_fallthru
      _
    %p509 = scmp.le.s32.totalorder 1, %s26
    %p510 = scmp.lt.s32.totalorder %s26, 17
    %p511 = pnand %p509, %p510
    %p512 = pneg %p511
    // Predicated region
    $region61: #{_lambda_.3} parent=5 // pred_check
      _
    $region62: #{_lambda_.3} parent=5 // pred_check_branch
      %514 = sbr.rel (%p511) target = $region64
    $region63: #{_lambda_.3} parent=5 // pred_region
      %s515 = ssub.s32 %s26, 1
      %p516 = scmp.lt.s32.totalorder %s35, 0
      %s517 = ssub.s32 0, %s35
      %s518 = scalar_select %p516, %s517, %s35
      %s519 = sand.u32 %s518, 1
      %s520 = ssub.s32 0, %s519
      %s521 = scalar_select %p516, %s520, %s519
      %p522 = scmp.ne.s32.totalorder %s521, 0
      %p523 = scmp.lt.s32.totalorder %s521, 0
      %p524 = pnand %p523, %p522
      %p525 = pneg %p524
      %s526 = sadd.s32 %s521, 2
      %s527 = scalar_select %p525, %s526, %s521
      %p528 = scmp.lt.s32.totalorder %s527, 1
      %s529 = scalar_select %p528, %s527, 1
      %s530 = smul.addr %s529, 2
      %s531 = smul.addr %s530, 8
      %s532 = scalar_lea.vmem %s1, %s531
      %p533 = pneg %p88
      %p534 = pneg %p85
      %p535 = scmp.lt.s32.totalorder %s35, 0
      %s536 = ssub.s32 0, %s35
      %s537 = scalar_select %p535, %s536, %s35
      %s538 = sand.u32 %s537, 1
      %s539 = ssub.s32 0, %s538
      %s540 = scalar_select %p535, %s539, %s538
      %p541 = scmp.ne.s32.totalorder %s540, 0
      %p542 = scmp.lt.s32.totalorder %s540, 0
      %p543 = pnand %p542, %p541
      %p544 = pneg %p543
      %s545 = sadd.s32 %s540, 2
      %s546 = scalar_select %p544, %s545, %s540
      %p547 = scmp.lt.s32.totalorder %s546, 1
      %s548 = scalar_select %p547, %s546, 1
      %s549 = smul.addr %s548, 2
      %s550 = smul.addr %s549, 8
      %s551 = scalar_lea.vmem %s2, %s550
      %p552 = pneg %p138
      %p553 = pneg %p135
      %p554 = scmp.lt.s32.totalorder %s35, 3
      %s555 = scalar_select %p554, %s35, 3
      %s556 = scalar_lea.vmem %s3, %s555
      %p557 = pneg %p164
      %p558 = pneg %p161
      %p559 = scmp.lt.s32.totalorder %s36, 3
      %s560 = scalar_select %p559, %s36, 3
      %s561 = smul.addr %s560, 4
      %s562 = smul.addr %s561, 4
      %s563 = scalar_lea.vmem %s4, %s562
      %p564 = pneg %p190
      %p565 = pneg %p187
      %p566 = scmp.lt.s32.totalorder %s36, 3
      %s567 = scalar_select %p566, %s36, 3
      %s568 = smul.addr %s567, 2
      %s569 = smul.addr %s568, 8
      %s570 = scalar_lea.vmem %s5, %s569
      %p571 = pneg %p216
      %p572 = pneg %p213
      %p573 = scmp.lt.s32.totalorder %s36, 3
      %s574 = scalar_select %p573, %s36, 3
      %s575 = smul.addr %s574, 8
      %s576 = smul.addr %s575, 4
      %s577 = scalar_lea.vmem %s6, %s576
      %p578 = pneg %p242
      %p579 = pneg %p239
      %p580 = scmp.lt.s32.totalorder %s36, 3
      %s581 = scalar_select %p580, %s36, 3
      %s582 = scalar_lea.vmem %s7, %s581
      %p583 = pneg %p268
      %p584 = pneg %p265
      %p585 = pneg %p289
      %p586 = pneg %p286
      %p587 = pneg %p310
      %p588 = pneg %p307
      %p589 = pneg %p331
      %p590 = pneg %p328
      %p591 = pneg %p352
      %p592 = pneg %p349
      %p593 = pneg %p378
      %p594 = pneg %p375
      %p595 = scmp.lt.s32.totalorder %s35, 3
      %s596 = scalar_select %p595, %s35, 3
      %s597 = smul.addr %s596, 3
      %s598 = smul.addr %s597, 8
      %s599 = scalar_lea.vmem %s12, %s598
      %p600 = scmp.lt.s32.totalorder %s35, 0
      %s601 = ssub.s32 0, %s35
      %s602 = scalar_select %p600, %s601, %s35
      %s603 = sand.u32 %s602, 1
      %s604 = ssub.s32 0, %s603
      %s605 = scalar_select %p600, %s604, %s603
      %p606 = scmp.ne.s32.totalorder %s605, 0
      %p607 = scmp.lt.s32.totalorder %s605, 0
      %p608 = pnand %p607, %p606
      %p609 = pneg %p608
      %s610 = sadd.s32 %s605, 2
      %s611 = scalar_select %p609, %s610, %s605
      %p612 = scmp.lt.s32.totalorder %s611, 1
      %s613 = scalar_select %p612, %s611, 1
      %s614 = smul.addr %s613, 2
      %s615 = smul.addr %s614, 8
      %s616 = scalar_lea.vmem %s1, %s615
      %p617 = scmp.lt.s32.totalorder %s35, 0
      %s618 = ssub.s32 0, %s35
      %s619 = scalar_select %p617, %s618, %s35
      %s620 = sand.u32 %s619, 1
      %s621 = ssub.s32 0, %s620
      %s622 = scalar_select %p617, %s621, %s620
      %p623 = scmp.ne.s32.totalorder %s622, 0
      %p624 = scmp.lt.s32.totalorder %s622, 0
      %p625 = pnand %p624, %p623
      %p626 = pneg %p625
      %s627 = sadd.s32 %s622, 2
      %s628 = scalar_select %p626, %s627, %s622
      %p629 = scmp.lt.s32.totalorder %s35, 0
      %s630 = ssub.s32 0, %s35
      %s631 = scalar_select %p629, %s630, %s35
      %s632 = sand.u32 %s631, 1
      %s633 = ssub.s32 0, %s632
      %s634 = scalar_select %p629, %s633, %s632
      %p635 = scmp.ne.s32.totalorder %s634, 0
      %p636 = scmp.lt.s32.totalorder %s634, 0
      %p637 = pnand %p636, %p635
      %p638 = pneg %p637
      %s639 = sadd.s32 %s634, 2
      %s640 = scalar_select %p638, %s639, %s634
      %p641 = scmp.lt.s32.totalorder %s640, 1
      %s642 = scalar_select %p641, %s640, 1
      %s643 = smul.addr %s642, 2
      %s644 = smul.addr %s643, 8
      %s645 = scalar_lea.vmem %s2, %s644
      %p646 = scmp.lt.s32.totalorder %s35, 0
      %s647 = ssub.s32 0, %s35
      %s648 = scalar_select %p646, %s647, %s35
      %s649 = sand.u32 %s648, 1
      %s650 = ssub.s32 0, %s649
      %s651 = scalar_select %p646, %s650, %s649
      %p652 = scmp.ne.s32.totalorder %s651, 0
      %p653 = scmp.lt.s32.totalorder %s651, 0
      %p654 = pnand %p653, %p652
      %p655 = pneg %p654
      %s656 = sadd.s32 %s651, 2
      %s657 = scalar_select %p655, %s656, %s651
      %p658 = scmp.lt.s32.totalorder %s35, 3
      %s659 = scalar_select %p658, %s35, 3
      %s660 = scalar_lea.vmem %s3, %s659
      %p661 = scmp.lt.s32.totalorder %s36, 3
      %s662 = scalar_select %p661, %s36, 3
      %s663 = smul.addr %s662, 4
      %s664 = smul.addr %s663, 4
      %s665 = scalar_lea.vmem %s4, %s664
      %p666 = scmp.lt.s32.totalorder %s36, 3
      %s667 = scalar_select %p666, %s36, 3
      %s668 = smul.addr %s667, 2
      %s669 = smul.addr %s668, 8
      %s670 = scalar_lea.vmem %s5, %s669
      %p671 = scmp.lt.s32.totalorder %s36, 3
      %s672 = scalar_select %p671, %s36, 3
      %s673 = smul.addr %s672, 8
      %s674 = smul.addr %s673, 4
      %s675 = scalar_lea.vmem %s6, %s674
      %p676 = scmp.lt.s32.totalorder %s36, 3
      %s677 = scalar_select %p676, %s36, 3
      %s678 = scalar_lea.vmem %s7, %s677
      %p679 = scmp.lt.s32.totalorder %s35, 3
      %s680 = scalar_select %p679, %s35, 3
      %s681 = smul.addr %s680, 3
      %s682 = smul.addr %s681, 8
      %s683 = scalar_lea.vmem %s12, %s682
      %s685 = sld [smem:[#allocation6 + %s36]]
      %p686 = scmp.eq.s32.totalorder %s36, 0
      // Predicated region
      $region65: #{_lambda_.3} parent=63 // pred_check
        %p687 = pneg %p686
      $region66: #{_lambda_.3} parent=63 // pred_check_branch
        %689 = sbr.rel (%p687) target = $region68
      $region67: #{_lambda_.3} parent=63 // pred_region
        %v690 = vld [vmem:[%s616] sm:$0xff]
        %v691 = vld [vmem:[%s616 + $0x8] sm:$0xff]
        %v692 = vld [vmem:[%s660] sm:$0x1]
        %v694 = vperm.slane %v692, 0
        %v696 = vadd.f32 %v690, %v694
        %v697 = vadd.f32 %v691, %v694
        %vm698 = vcmask 261120
        %699 = vst.msk [vmem:[#allocation2] sm:$0xff] %vm698, %v696
        %700 = vst.msk [vmem:[#allocation2 + $0x8] sm:$0xff] %vm698, %v697
        %701 = vst.msk [vmem:[#allocation3] sm:$0xff] %vm698, 0.0
        %702 = vst.msk [vmem:[#allocation3 + $0x8] sm:$0xff] %vm698, 0.0
        %vm703 = vcmask 523264
        %704 = vst.msk [vmem:[#allocation4] sm:$0xff] %vm703, 0.0
        %705 = vst.msk [vmem:[#allocation4 + $0x18] sm:$0xff] %vm703, 0.0
      $region68: #{_lambda_.3} parent=63 // pred_fallthru
        _
      %v706 = vld [vmem:[#allocation2] sm:$0xff]
      %v707 = vld [vmem:[#allocation2 + $0x8] sm:$0xff]
      %v708 = vld [vmem:[%s670] sm:$0x1]
      %v709 = vld [vmem:[%s670 + $0x1] sm:$0x1]
      %v710 = vld [vmem:[%s670 + $0x2] sm:$0x1]
      %v711 = vld [vmem:[%s670 + $0x3] sm:$0x1]
      %v712 = vld [vmem:[%s670 + $0x4] sm:$0x1]
      %v713 = vld [vmem:[%s670 + $0x5] sm:$0x1]
      %v714 = vld [vmem:[%s670 + $0x6] sm:$0x1]
      %v715 = vld [vmem:[%s670 + $0x7] sm:$0x1]
      %v716 = vld [vmem:[%s670 + $0x8] sm:$0x1]
      %v717 = vpack.c.bf16 %v707, %v706
      %v718 = vld [vmem:[%s665] sm:$0xf]
      %v719 = vld [vmem:[%s665 + $0x4] sm:$0xf]
      %v720 = vld [vmem:[%s665 + $0x8] sm:$0xf]
      %v721 = vld [vmem:[%s665 + $0xc] sm:$0xf]
      %v722 = vperm.slane %v708, 0
      %v727 = vunpack.c.l.b16 %v718
      %v728 = vunpack.c.l.b16 %v719
      %v729 = vunpack.c.l.b16 %v720
      %v730 = vunpack.c.l.b16 %v721
      %v731 = vpack.c.b16 %v728, %v727
      %v732 = vpack.c.b16 %v730, %v729
      %vm735 = vcmask 261120
      %v737 = vsel %vm735, %v717, 0
      %739 = vmatpush.bf16.msra.mxu0 0
      %740 = vmatpush.bf16.msra.mxu0 0
      %741 = vmatpush.bf16.msra.mxu0 0
      %742 = vmatpush.bf16.msra.mxu0 0
      %743 = vmatpush.bf16.msra.mxu0 0
      %744 = vmatpush.bf16.msra.mxu0 0
      %745 = vmatpush.bf16.msra.mxu0 %v732
      %746 = vmatpush.bf16.msra.mxu0 %v731
      %747 = vmatmul.bf16.gmra.mxu0 %v737
      %v748 = vpop.f32.mrf.mxu0
      %v749 = vadd.f32 %v722, %v748
      %v750 = vpop.f32.mrf.mxu0
      %v751 = vadd.f32 %v722, %v750
      %752 = vdwg.mxu0
      %vm753 = vcmp.ge.f32.partialorder %v749, 0.0
      %vm754 = vcmp.ge.f32.partialorder %v751, 0.0
      %v755 = vmul.f32 %v749, 0.25
      %v756 = vmul.f32 %v751, 0.25
      %v757 = vsel %vm753, %v749, %v755
      %v758 = vsel %vm754, %v751, %v756
      %vm759 = vcmask 523264
      %v760 = vsel %vm759, %v757, 0.0
      %v761 = vsel %vm759, %v758, 0.0
      %v762 = vadd.f32 %v760, %v761
      %763 = vadd.xlane.f32.xlu0 %v762
      %v764 = vpop.xlane.xlu0 %763
      %v765 = vrot.slane %v764, 4
      %v766 = vadd.f32 %v764, %v765
      %v767 = vrot.slane %v766, 2
      %v768 = vadd.f32 %v766, %v767
      %v769 = vrot.slane %v768, 1
      %v770 = vadd.f32 %v768, %v769
      %s771 = vtos %v770
      %v772 = vmul.f32 %v757, %v757
      %v773 = vmul.f32 %v758, %v758
      %v774 = vsel %vm759, %v772, 0.0
      %v775 = vsel %vm759, %v773, 0.0
      %v776 = vadd.f32 %v774, %v775
      %777 = vadd.xlane.f32.xlu0 %v776
      %v778 = vpop.xlane.xlu0 %777
      %v779 = vrot.slane %v778, 4
      %v780 = vadd.f32 %v778, %v779
      %v781 = vrot.slane %v780, 2
      %v782 = vadd.f32 %v780, %v781
      %v783 = vrot.slane %v782, 1
      %v784 = vadd.f32 %v782, %v783
      %s785 = vtos %v784
      %v786 = vrcp.pop 1024.0
      %v787 = vmul.f32 1024.0, %v786
      %v788 = vsub.f32 1.0, %v787
      %v789 = vmul.f32 %v786, %v788
      %v790 = vadd.f32 %v786, %v789
      %vm791 = vweird.f32 %v786
      %v792 = vsel %vm791, %v786, %v790
      %s793 = vtos %v792
      %s794 = smul.f32 %s771, %s793
      %v795 = vrcp.pop 1024.0
      %v796 = vmul.f32 1024.0, %v795
      %v797 = vsub.f32 1.0, %v796
      %v798 = vmul.f32 %v795, %v797
      %v799 = vadd.f32 %v795, %v798
      %vm800 = vweird.f32 %v795
      %v801 = vsel %vm800, %v795, %v799
      %s802 = vtos %v801
      %s803 = smul.f32 %s785, %s802
      %s804 = smul.f32 %s794, %s794
      %s805 = ssub.f32 %s803, %s804
      %s806 = smax.f32 %s805, 0.0
      %v807 = vstv %s794
      %v808 = vsub.f32 %v757, %v807
      %v809 = vsub.f32 %v758, %v807
      %s810 = sadd.f32 %s806, 1e-08
      %v811 = vstv %s810
      %v812 = vrsqrt.pop %v811
      %v813 = vmul.f32 %v812, %v811
      %v814 = vmul.f32 %v813, %v812
      %v815 = vmul.f32 0.5, %v814
      %v816 = vsub.f32 1.5, %v815
      %v817 = vmul.f32 %v812, %v816
      %vm818 = vweird.f32 %v811
      %vm819 = vweird.f32 %v812
      %vm820 = vmor %vm818, %vm819
      %v821 = vsel %vm820, %v812, %v817
      %s822 = vtos %v821
      %v823 = vstv %s822
      %v824 = vmul.f32 %v808, %v823
      %v825 = vmul.f32 %v809, %v823
      %v826 = vperm.slane %v709, 0
      %v827 = vmul.f32 %v824, %v826
      %v828 = vmul.f32 %v825, %v826
      %v829 = vperm.slane %v710, 0
      %v830 = vadd.f32 %v827, %v829
      %v831 = vadd.f32 %v828, %v829
      %832 = vst.msk [vmem:[#allocation4 + $0x8] sm:$0xff] %vm759, %v830
      %833 = vst.msk [vmem:[#allocation4 + $0x10] sm:$0xff] %vm759, %v831
      %s834 = ssub.s32 8, %s685
      %s835 = scalar_lea.vmem [#allocation4], %s834
      %v836 = vld [vmem:[%s835] sm:$0xff]
      %v837 = vld [vmem:[%s835 + $0x8] sm:$0xff]
      %v838 = vperm.slane %v711, 0
      %v839 = vmul.f32 %v836, %v838
      %v840 = vmul.f32 %v837, %v838
      %v841 = vperm.slane %v712, 0
      %v842 = vmul.f32 %v830, %v841
      %v843 = vmul.f32 %v831, %v841
      %v844 = vadd.f32 %v839, %v842
      %v845 = vadd.f32 %v840, %v843
      %s846 = sadd.s32 %s685, 8
      %s847 = scalar_lea.vmem [#allocation4], %s846
      %v848 = vld [vmem:[%s847] sm:$0xff]
      %v849 = vld [vmem:[%s847 + $0x8] sm:$0xff]
      %v850 = vperm.slane %v713, 0
      %v851 = vmul.f32 %v848, %v850
      %v852 = vmul.f32 %v849, %v850
      %v853 = vadd.f32 %v844, %v851
      %v854 = vadd.f32 %v845, %v852
      %v855 = vperm.slane %v714, 0
      %v856 = vadd.f32 %v853, %v855
      %v857 = vadd.f32 %v854, %v855
      %vm858 = vcmp.ge.f32.partialorder %v856, 0.0
      %vm859 = vcmp.ge.f32.partialorder %v857, 0.0
      %v860 = vmul.f32 %v856, 0.25
      %v861 = vmul.f32 %v857, 0.25
      %v862 = vsel %vm858, %v856, %v860
      %v863 = vsel %vm859, %v857, %v861
      %v864 = vsel %vm759, %v862, 0.0
      %v865 = vsel %vm759, %v863, 0.0
      %v866 = vadd.f32 %v864, %v865
      %867 = vadd.xlane.f32.xlu0 %v866
      %v868 = vpop.xlane.xlu0 %867
      %v869 = vrot.slane %v868, 4
      %v870 = vadd.f32 %v868, %v869
      %v871 = vrot.slane %v870, 2
      %v872 = vadd.f32 %v870, %v871
      %v873 = vrot.slane %v872, 1
      %v874 = vadd.f32 %v872, %v873
      %s875 = vtos %v874
      %v876 = vmul.f32 %v862, %v862
      %v877 = vmul.f32 %v863, %v863
      %v878 = vsel %vm759, %v876, 0.0
      %v879 = vsel %vm759, %v877, 0.0
      %v880 = vadd.f32 %v878, %v879
      %881 = vadd.xlane.f32.xlu0 %v880
      %v882 = vpop.xlane.xlu0 %881
      %v883 = vrot.slane %v882, 4
      %v884 = vadd.f32 %v882, %v883
      %v885 = vrot.slane %v884, 2
      %v886 = vadd.f32 %v884, %v885
      %v887 = vrot.slane %v886, 1
      %v888 = vadd.f32 %v886, %v887
      %s889 = vtos %v888
      %v890 = vrcp.pop 1024.0
      %v891 = vmul.f32 1024.0, %v890
      %v892 = vsub.f32 1.0, %v891
      %v893 = vmul.f32 %v890, %v892
      %v894 = vadd.f32 %v890, %v893
      %vm895 = vweird.f32 %v890
      %v896 = vsel %vm895, %v890, %v894
      %s897 = vtos %v896
      %s898 = smul.f32 %s875, %s897
      %v899 = vrcp.pop 1024.0
      %v900 = vmul.f32 1024.0, %v899
      %v901 = vsub.f32 1.0, %v900
      %v902 = vmul.f32 %v899, %v901
      %v903 = vadd.f32 %v899, %v902
      %vm904 = vweird.f32 %v899
      %v905 = vsel %vm904, %v899, %v903
      %s906 = vtos %v905
      %s907 = smul.f32 %s889, %s906
      %s908 = smul.f32 %s898, %s898
      %s909 = ssub.f32 %s907, %s908
      %s910 = smax.f32 %s909, 0.0
      %v911 = vstv %s898
      %v912 = vsub.f32 %v862, %v911
      %v913 = vsub.f32 %v863, %v911
      %s914 = sadd.f32 %s910, 1e-08
      %v915 = vstv %s914
      %v916 = vrsqrt.pop %v915
      %v917 = vmul.f32 %v916, %v915
      %v918 = vmul.f32 %v917, %v916
      %v919 = vmul.f32 0.5, %v918
      %v920 = vsub.f32 1.5, %v919
      %v921 = vmul.f32 %v916, %v920
      %vm922 = vweird.f32 %v915
      %vm923 = vweird.f32 %v916
      %vm924 = vmor %vm922, %vm923
      %v925 = vsel %vm924, %v916, %v921
      %s926 = vtos %v925
      %v927 = vstv %s926
      %v928 = vmul.f32 %v912, %v927
      %v929 = vmul.f32 %v913, %v927
      %v930 = vperm.slane %v715, 0
      %v931 = vmul.f32 %v928, %v930
      %v932 = vmul.f32 %v929, %v930
      %v933 = vperm.slane %v716, 0
      %v934 = vadd.f32 %v931, %v933
      %v935 = vadd.f32 %v932, %v933
      %v936 = vpack.c.bf16 %v935, %v934
      %v937 = vld [vmem:[%s675] sm:$0xf]
      %v938 = vld [vmem:[%s675 + $0x4] sm:$0xf]
      %v939 = vld [vmem:[%s675 + $0x8] sm:$0xf]
      %v940 = vld [vmem:[%s675 + $0xc] sm:$0xf]
      %v941 = vld [vmem:[%s675 + $0x10] sm:$0xf]
      %v942 = vld [vmem:[%s675 + $0x14] sm:$0xf]
      %v943 = vld [vmem:[%s675 + $0x18] sm:$0xf]
      %v944 = vld [vmem:[%s675 + $0x1c] sm:$0xf]
      %v945 = vld [vmem:[%s678] sm:$0x1]
      %v947 = vperm.slane %v945, 0
      %v957 = vunpack.c.l.b16 %v937
      %v958 = vunpack.c.l.b16 %v938
      %v959 = vunpack.c.l.b16 %v939
      %v960 = vunpack.c.l.b16 %v940
      %v961 = vunpack.c.l.b16 %v941
      %v962 = vunpack.c.l.b16 %v942
      %v963 = vunpack.c.l.b16 %v943
      %v964 = vunpack.c.l.b16 %v944
      %v965 = vpack.c.b16 %v958, %v957
      %v966 = vpack.c.b16 %v960, %v959
      %v967 = vpack.c.b16 %v962, %v961
      %v968 = vpack.c.b16 %v964, %v963
      %v974 = vsel %vm759, %v936, 0
      %976 = vmatpush.bf16.msra.mxu0 0
      %977 = vmatpush.bf16.msra.mxu0 0
      %978 = vmatpush.bf16.msra.mxu0 0
      %979 = vmatpush.bf16.msra.mxu0 0
      %980 = vmatpush.bf16.msra.mxu0 %v968
      %981 = vmatpush.bf16.msra.mxu0 %v967
      %982 = vmatpush.bf16.msra.mxu0 %v966
      %983 = vmatpush.bf16.msra.mxu0 %v965
      %984 = vmatmul.bf16.gmra.mxu0 %v974
      %v985 = vpop.f32.mrf.mxu0
      %v986 = vadd.f32 %v947, %v985
      %v987 = vpop.f32.mrf.mxu0
      %v988 = vadd.f32 %v947, %v987
      %989 = vdwg.mxu0
      %v990 = vld [vmem:[#allocation3] sm:$0xff]
      %v991 = vld [vmem:[#allocation3 + $0x8] sm:$0xff]
      %v992 = vadd.f32 %v990, %v986
      %v993 = vadd.f32 %v991, %v988
      %994 = vst.msk [vmem:[#allocation3] sm:$0xff] %vm735, %v992
      %995 = vst.msk [vmem:[#allocation3 + $0x8] sm:$0xff] %vm735, %v993
      %998 = vrot.lane.b32.xlu0 %v986, 96
      %v999 = vpop.permute.xlu0 %998
      %1000 = vrot.lane.b32.xlu0 %v988, 96
      %v1001 = vpop.permute.xlu0 %1000
      %v1004 = vadd.f32 %v706, %v999
      %v1005 = vadd.f32 %v707, %v1001
      %1006 = vst.msk [vmem:[#allocation2] sm:$0xff] %vm735, %v1004
      %1007 = vst.msk [vmem:[#allocation2 + $0x8] sm:$0xff] %vm735, %v1005
      %p1008 = scmp.eq.s32.totalorder %s36, 3
      // Predicated region
      $region69: #{_lambda_.3} parent=63 // pred_check
        %p1009 = pneg %p1008
      $region70: #{_lambda_.3} parent=63 // pred_check_branch
        %1011 = sbr.rel (%p1009) target = $region72
      $region71: #{_lambda_.3} parent=63 // pred_region
        %v1012 = vld [vmem:[#allocation3] sm:$0xff]
        %v1013 = vld [vmem:[#allocation3 + $0x8] sm:$0xff]
        %vm1014 = vcmp.ge.f32.partialorder %v1012, 0.0
        %vm1015 = vcmp.ge.f32.partialorder %v1013, 0.0
        %v1016 = vmul.f32 %v1012, 0.25
        %v1017 = vmul.f32 %v1013, 0.25
        %v1018 = vsel %vm1014, %v1012, %v1016
        %v1019 = vsel %vm1015, %v1013, %v1017
        %v1020 = vpack.c.bf16 %v1019, %v1018
        %v1021 = vld [vmem:[%s8] sm:$0xf]
        %v1022 = vld [vmem:[%s8 + $0x4] sm:$0xf]
        %v1023 = vld [vmem:[%s8 + $0x8] sm:$0xf]
        %v1024 = vld [vmem:[%s8 + $0xc] sm:$0xf]
        %v1025 = vld [vmem:[%s9] sm:$0x1]
        %v1027 = vperm.slane %v1025, 0
        %v1033 = vunpack.c.l.b16 %v1021
        %v1034 = vunpack.c.l.b16 %v1022
        %v1035 = vunpack.c.l.b16 %v1023
        %v1036 = vunpack.c.l.b16 %v1024
        %v1037 = vpack.c.b16 %v1034, %v1033
        %v1038 = vpack.c.b16 %v1036, %v1035
        %v1042 = vsel %vm735, %v1020, 0
        %1044 = vmatpush.bf16.msra.mxu0 0
        %1045 = vmatpush.bf16.msra.mxu0 0
        %1046 = vmatpush.bf16.msra.mxu0 0
        %1047 = vmatpush.bf16.msra.mxu0 0
        %1048 = vmatpush.bf16.msra.mxu0 0
        %1049 = vmatpush.bf16.msra.mxu0 0
        %1050 = vmatpush.bf16.msra.mxu0 %v1038
        %1051 = vmatpush.bf16.msra.mxu0 %v1037
        %1052 = vmatmul.bf16.gmra.mxu0 %v1042
        %v1053 = vpop.f32.mrf.mxu0
        %v1054 = vadd.f32 %v1027, %v1053
        %v1055 = vpop.f32.mrf.mxu0
        %v1056 = vadd.f32 %v1027, %v1055
        %1057 = vdwg.mxu0
        %v1058 = vxor.u32 %v1054, 2147483648
        %v1059 = vxor.u32 %v1056, 2147483648
        %v1060 = vmul.f32 %v1058, 1.442695
        %v1061 = vpow.pop %v1060
        %v1062 = vmul.f32 %v1059, 1.442695
        %v1063 = vpow.pop %v1062
        %v1064 = vadd.f32 %v1061, 1.0
        %v1065 = vadd.f32 %v1063, 1.0
        %v1066 = vrcp.pop %v1064
        %v1067 = vmul.f32 %v1064, %v1066
        %v1068 = vsub.f32 1.0, %v1067
        %v1069 = vmul.f32 %v1066, %v1068
        %v1070 = vadd.f32 %v1066, %v1069
        %vm1071 = vweird.f32 %v1064
        %vm1072 = vweird.f32 %v1066
        %vm1073 = vmor %vm1071, %vm1072
        %v1074 = vsel %vm1073, %v1066, %v1070
        %v1075 = vand.u32 2147483647, %v1064
        %vm1076 = vcmp.eq.f32.partialorder %v1075, 8.507059e+37
        %v1077 = vand.u32 %v1064, 2147483648
        %v1078 = vor.u32 1.1754944e-38, %v1077
        %v1079 = vsel %vm1076, %v1078, %v1074
        %v1080 = vmul.f32 1.0, %v1079
        %v1081 = vrcp.pop %v1065
        %v1082 = vmul.f32 %v1065, %v1081
        %v1083 = vsub.f32 1.0, %v1082
        %v1084 = vmul.f32 %v1081, %v1083
        %v1085 = vadd.f32 %v1081, %v1084
        %vm1086 = vweird.f32 %v1065
        %vm1087 = vweird.f32 %v1081
        %vm1088 = vmor %vm1086, %vm1087
        %v1089 = vsel %vm1088, %v1081, %v1085
        %v1090 = vand.u32 2147483647, %v1065
        %vm1091 = vcmp.eq.f32.partialorder %v1090, 8.507059e+37
        %v1092 = vand.u32 %v1065, 2147483648
        %v1093 = vor.u32 1.1754944e-38, %v1092
        %v1094 = vsel %vm1091, %v1093, %v1089
        %v1095 = vmul.f32 1.0, %v1094
        %v1096 = vld [vmem:[%s645] sm:$0xff]
        %v1097 = vld [vmem:[%s645 + $0x8] sm:$0xff]
        %v1098 = vmul.f32 %v1080, %v1096
        %v1099 = vmul.f32 %v1095, %v1097
        %v1100 = vpack.c.bf16 %v1099, %v1098
        %v1101 = vld [vmem:[%s10] sm:$0xf]
        %v1102 = vld [vmem:[%s10 + $0x4] sm:$0xf]
        %v1103 = vld [vmem:[%s10 + $0x8] sm:$0xf]
        %v1104 = vld [vmem:[%s10 + $0xc] sm:$0xf]
        %v1105 = vld [vmem:[%s10 + $0x10] sm:$0xf]
        %v1106 = vld [vmem:[%s10 + $0x14] sm:$0xf]
        %v1107 = vld [vmem:[%s10 + $0x18] sm:$0xf]
        %v1108 = vld [vmem:[%s10 + $0x1c] sm:$0xf]
        %v1117 = vunpack.c.l.b16 %v1101
        %v1118 = vunpack.c.l.b16 %v1102
        %v1119 = vunpack.c.l.b16 %v1103
        %v1120 = vunpack.c.l.b16 %v1104
        %v1121 = vunpack.c.l.b16 %v1105
        %v1122 = vunpack.c.l.b16 %v1106
        %v1123 = vunpack.c.l.b16 %v1107
        %v1124 = vunpack.c.l.b16 %v1108
        %v1125 = vpack.c.b16 %v1118, %v1117
        %v1126 = vpack.c.b16 %v1120, %v1119
        %v1127 = vpack.c.b16 %v1122, %v1121
        %v1128 = vpack.c.b16 %v1124, %v1123
        %v1134 = vsel %vm759, %v1100, 0
        %1136 = vmatpush.bf16.msra.mxu0 0
        %1137 = vmatpush.bf16.msra.mxu0 0
        %1138 = vmatpush.bf16.msra.mxu0 0
        %1139 = vmatpush.bf16.msra.mxu0 0
        %1140 = vmatpush.bf16.msra.mxu0 %v1128
        %1141 = vmatpush.bf16.msra.mxu0 %v1127
        %1142 = vmatpush.bf16.msra.mxu0 %v1126
        %1143 = vmatpush.bf16.msra.mxu0 %v1125
        %1144 = vmatmul.bf16.gmra.mxu0 %v1134
        %v1145 = vpop.f32.mrf.mxu0
        %v1146 = vadd.f32 0.0, %v1145
        %v1147 = vpop.f32.mrf.mxu0
        %v1148 = vadd.f32 0.0, %v1147
        %1149 = vdwg.mxu0
        %v1150 = vld [vmem:[%s11] sm:$0xf]
        %v1151 = vld [vmem:[%s11 + $0x4] sm:$0xf]
        %v1152 = vld [vmem:[%s11 + $0x8] sm:$0xf]
        %v1153 = vld [vmem:[%s11 + $0xc] sm:$0xf]
        %v1154 = vld [vmem:[%s11 + $0x10] sm:$0xf]
        %v1155 = vld [vmem:[%s11 + $0x14] sm:$0xf]
        %v1156 = vld [vmem:[%s11 + $0x18] sm:$0xf]
        %v1157 = vld [vmem:[%s11 + $0x1c] sm:$0xf]
        %v1166 = vunpack.c.l.b16 %v1150
        %v1167 = vunpack.c.l.b16 %v1151
        %v1168 = vunpack.c.l.b16 %v1152
        %v1169 = vunpack.c.l.b16 %v1153
        %v1170 = vunpack.c.l.b16 %v1154
        %v1171 = vunpack.c.l.b16 %v1155
        %v1172 = vunpack.c.l.b16 %v1156
        %v1173 = vunpack.c.l.b16 %v1157
        %v1174 = vpack.c.b16 %v1167, %v1166
        %v1175 = vpack.c.b16 %v1169, %v1168
        %v1176 = vpack.c.b16 %v1171, %v1170
        %v1177 = vpack.c.b16 %v1173, %v1172
        %1182 = vmatpush.bf16.msra.mxu0 0
        %1183 = vmatpush.bf16.msra.mxu0 0
        %1184 = vmatpush.bf16.msra.mxu0 0
        %1185 = vmatpush.bf16.msra.mxu0 0
        %1186 = vmatpush.bf16.msra.mxu0 %v1177
        %1187 = vmatpush.bf16.msra.mxu0 %v1176
        %1188 = vmatpush.bf16.msra.mxu0 %v1175
        %1189 = vmatpush.bf16.msra.mxu0 %v1174
        %1190 = vmatmul.bf16.gmra.mxu0 %v1134
        %v1191 = vpop.f32.mrf.mxu0
        %v1192 = vadd.f32 0.0, %v1191
        %v1193 = vpop.f32.mrf.mxu0
        %v1194 = vadd.f32 0.0, %v1193
        %1195 = vdwg.mxu0
        %vm1196 = vcmask 57344
        %1197 = vst.msk [vmem:[%s683] sm:$0x1] %vm1196, %v1146
        %vm1200 = vcmask 1040384
        %v1201 = vrot.slane %v1192, 7
        %v1202 = vrot.slane %v1194, 7
        %v1203 = vsel %vm1200, %v1201, %v1202
        %v1206 = vadd.f32 %v1146, %v1201
        %v1207 = vadd.f32 %v1148, %v1203
        %vm1208 = vcmask 64513
        %1209 = vst.msk [vmem:[%s683] sm:$0xfe] %vm1208, %v1206
        %vm1210 = vcmask 64512
        %1211 = vst.msk [vmem:[%s683 + $0x8] sm:$0xff] %vm1210, %v1207
        %vm1212 = vcmask 64519
        %1213 = vst.msk [vmem:[%s683 + $0x9] sm:$0x80] %vm1212, %v1194
      $region72: #{_lambda_.3} parent=63 // pred_fallthru
        _
      %p1214 = scmp.lt.s32.totalorder %s35, 3
      %s1215 = scalar_select %p1214, %s35, 3
      %s1216 = smul.addr %s1215, 3
      %s1217 = smul.addr %s1216, 8
      %s1218 = scalar_lea.vmem %s12, %s1217
      // Predicated region
      $region73: #{_lambda_.3} parent=63 // pred_check
        %p1219 = pneg %p375
      $region74: #{_lambda_.3} parent=63 // pred_check_branch
        %1221 = sbr.rel (%p1219) target = $region76
      $region75: #{_lambda_.3} parent=63 // pred_region
        _
      $region76: #{_lambda_.3} parent=63 // pred_fallthru
        _
    $region64: #{_lambda_.3} parent=5 // pred_fallthru
      _
    %p1222 = scmp.le.s32.totalorder 2, %s26
    // Predicated region
    $region77: #{_lambda_.3} parent=5 // pred_check
      %p1223 = pneg %p1222
    $region78: #{_lambda_.3} parent=5 // pred_check_branch
      %1225 = sbr.rel (%p1223) target = $region80
    $region79: #{_lambda_.3} parent=5 // pred_region
      %s1226 = ssub.s32 %s26, 2
      // Predicated region
      $region81: #{_lambda_.3} parent=79 // pred_check
        %p1227 = pneg %p381
      $region82: #{_lambda_.3} parent=79 // pred_check_branch
        %1229 = sbr.rel (%p1227) target = $region84
      $region83: #{_lambda_.3} parent=79 // pred_region
        %p1230 = scmp.lt.s32.totalorder %s37, 3
        %s1231 = scalar_select %p1230, %s37, 3
        %s1232 = smul.addr %s1231, 3
        %s1233 = smul.addr %s1232, 8
        %s1234 = scalar_lea.vmem %s12, %s1233
      $region84: #{_lambda_.3} parent=79 // pred_fallthru
        _
    $region80: #{_lambda_.3} parent=5 // pred_fallthru
      _
  $region6: #{_lambda_.3} parent=0 // loop_footer
    %s30 = sadd.s32 1, %s26
  $region7: #{_lambda_.3} parent=0 // loop_footer_branch
    %25 = sbr.rel target = $region3
  $region8: #{_lambda_.3} parent=0 // loop_exit
    _

</llo_original>
